<compile_context>
chip_gen: v7x
topology: tpu7x:2x2x1
jax: 0.10.0
libtpu: 0.0.40
codegen_flags: <defaults>
</compile_context>

<pallas_src>
import functools
import math

import jax
import jax.numpy as jnp
from jax import lax
from jax.experimental import pallas as pl
from jax.experimental.pallas import tpu as pltpu


def _layer_norm(x, gamma, beta, eps=1e-5):
    mu = jnp.mean(x, axis=-1, keepdims=True)
    xc = x - mu
    var = jnp.mean(xc * xc, axis=-1, keepdims=True)
    return xc * lax.rsqrt(var + eps) * gamma + beta


def encoder_block_kernel(x_ref,
                         wq_ref, bq_ref, wk_ref, bk_ref, wv_ref, bv_ref,
                         w0_ref, b0_ref, g1_ref, be1_ref,
                         w1_ref, b1_ref, w2_ref, b2_ref,
                         g2_ref, be2_ref,
                         o_ref, *, n_heads, d_head, block_b, seq_len):
    d_model = n_heads * d_head
    m_rows = block_b * seq_len
    cdt = wq_ref.dtype                      # bf16 compute dtype for MXU inputs

    # Residual stream kept in f32; merge (block_b, S) into the matmul M dim
    # (leading-dim merge only -> no relayout).
    x = x_ref[...].reshape(m_rows, d_model)
    xb = x.astype(cdt)

    scale = 1.0 / math.sqrt(d_head)
    mha = jnp.zeros((m_rows, d_model), jnp.float32)

    # Per-head work uses leading-dim weight indexing (no lane slices); the
    # head outputs are folded straight into the W_0 projection (no concat).
    for h in range(n_heads):                      # small static unroll
        q = jnp.dot(xb, wq_ref[h], preferred_element_type=jnp.float32) + bq_ref[h]
        k = jnp.dot(xb, wk_ref[h], preferred_element_type=jnp.float32) + bk_ref[h]
        v = jnp.dot(xb, wv_ref[h], preferred_element_type=jnp.float32) + bv_ref[h]

        q = q.reshape(block_b, seq_len, d_head)   # leading-dim split (free)
        k = k.reshape(block_b, seq_len, d_head)
        v = v.reshape(block_b, seq_len, d_head)

        # Batched attention over the batch dim; f32 scores / softmax.
        s = jnp.einsum("bqd,bkd->bqk", q.astype(cdt), k.astype(cdt),
                       preferred_element_type=jnp.float32) * scale
        m = jnp.max(s, axis=-1, keepdims=True)
        p = jnp.exp(s - m)
        p = p * pl.reciprocal(jnp.sum(p, axis=-1, keepdims=True), approx=True)
        oh = jnp.einsum("bqk,bkd->bqd", p.astype(cdt), v.astype(cdt),
                        preferred_element_type=jnp.float32)     # (bB, S, dh)

        # concat(heads) @ W0^T  ==  sum_h  o_h @ W0_rows(h)
        oh = oh.reshape(m_rows, d_head)
        mha = mha + jnp.dot(oh.astype(cdt), w0_ref[h],
                            preferred_element_type=jnp.float32)

    mha = mha + b0_ref[...]
    # TODO(synk): nn.Dropout layers are identity in eval mode and the optional
    # attention mask (mask=None) is not implemented.
    y1 = _layer_norm(x + mha, g1_ref[...], be1_ref[...])         # Add & Norm 1

    # Position-wise FFN (bf16 MXU inputs, f32 accumulate / elementwise).
    h1 = jnp.dot(y1.astype(cdt), w1_ref[...],
                 preferred_element_type=jnp.float32) + b1_ref[...]
    h1 = jnp.maximum(h1, 0.0)                                    # ReLU
    ffn = jnp.dot(h1.astype(cdt), w2_ref[...],
                  preferred_element_type=jnp.float32) + b2_ref[...]

    y2 = _layer_norm(y1 + ffn, g2_ref[...], be2_ref[...])        # Add & Norm 2
    o_ref[...] = y2.reshape(block_b, seq_len, d_model).astype(o_ref.dtype)


def _pick_block_b(batch, seq, target_rows=256, min_grid=2):
    """Largest batch block s.t. M = block_b*seq stays <= target_rows while
    keeping >= min_grid grid steps (megacore + pipeline overlap) if possible."""
    divisors = [d for d in range(1, batch + 1) if batch % d == 0]
    good = [d for d in divisors if d * seq <= target_rows and batch // d >= min_grid]
    if not good:
        good = [d for d in divisors if d * seq <= target_rows] or [1]
    return max(good)


def transformer_encoder_block(x, params, *, n_heads, matmul_dtype=jnp.bfloat16):
    """Pallas forward of TransformerEncoderBlock (eval mode, mask=None).

    x: (B, S, d_model) float32
    params: nn.Linear weights (out,in), biases, LayerNorm gamma/beta (all f32).
    """
    B, S, D = x.shape
    d_ff = params["w1"].shape[0]
    assert D % n_heads == 0
    d_head = D // n_heads
    block_b = _pick_block_b(B, S)
    grid = (B // block_b,)
    cd = matmul_dtype

    # Wrapper-side layout plumbing (free here, avoids in-kernel relayouts):
    #   nn.Linear (out,in) -> (in,out); Q/K/V split per head to (H, D, dh);
    #   W_0 split to (H, dh, D); everything the MXU touches pre-cast to bf16.
    def split_qkv(w):                      # (D,D) -> (H, D, d_head)
        return jnp.transpose(w.T.reshape(D, n_heads, d_head), (1, 0, 2)).astype(cd)

    wq_h, wk_h, wv_h = split_qkv(params["wq"]), split_qkv(params["wk"]), split_qkv(params["wv"])
    w0_h = params["w0"].T.reshape(n_heads, d_head, D).astype(cd)
    w1_t = params["w1"].T.astype(cd)       # (D, d_ff)
    w2_t = params["w2"].T.astype(cd)       # (d_ff, D)

    bhead = lambda v: v.reshape(n_heads, 1, d_head)   # f32 per-head bias rows
    row = lambda v: v.reshape(1, -1)                  # f32 lane-dense rows
    bq_h, bk_h, bv_h = bhead(params["bq"]), bhead(params["bk"]), bhead(params["bv"])
    b0, b1, b2 = row(params["b0"]), row(params["b1"]), row(params["b2"])
    g1, be1 = row(params["g1"]), row(params["be1"])
    g2, be2 = row(params["g2"]), row(params["be2"])

    def const_spec(shape):                 # full-array block, constant index
        nd = len(shape)
        return pl.BlockSpec(shape, lambda b, _nd=nd: (0,) * _nd)

    in_specs = [
        pl.BlockSpec((block_b, S, D), lambda b: (b, 0, 0)),       # x tile
        const_spec((n_heads, D, d_head)), const_spec((n_heads, 1, d_head)),  # W_q, b_q
        const_spec((n_heads, D, d_head)), const_spec((n_heads, 1, d_head)),  # W_k, b_k
        const_spec((n_heads, D, d_head)), const_spec((n_heads, 1, d_head)),  # W_v, b_v
        const_spec((n_heads, d_head, D)), const_spec((1, D)),     # W_0, b_0
        const_spec((1, D)), const_spec((1, D)),                   # LN1 gamma, beta
        const_spec((D, d_ff)), const_spec((1, d_ff)),             # W_1, b_1
        const_spec((d_ff, D)), const_spec((1, D)),                # W_2, b_2
        const_spec((1, D)), const_spec((1, D)),                   # LN2 gamma, beta
    ]
    out_specs = pl.BlockSpec((block_b, S, D), lambda b: (b, 0, 0))

    # VMEM budget: double-buffered weights/tiles + f32 activation working set,
    # with headroom; clamped to [32 MiB, 100 MiB] (fits v5e/v6e; tiny here).
    wbytes = (4 * D * D + 2 * D * d_ff) * jnp.dtype(cd).itemsize
    pbytes = (3 * D + 7 * D + d_ff) * 4
    tbytes = 2 * block_b * S * D * 4
    abytes = block_b * S * (8 * D + 2 * d_ff) * 4
    vmem_limit = int(min(100 * 1024 * 1024,
                         max(32 * 1024 * 1024,
                             1.5 * (2 * (wbytes + pbytes + tbytes) + abytes))))

    flops = 2 * B * S * (4 * D * D + 2 * D * d_ff) + 4 * B * n_heads * S * S * d_head
    cost = pl.CostEstimate(
        flops=int(flops),
        transcendentals=int(B * n_heads * S * S),
        bytes_accessed=int(2 * B * S * D * 4 + wbytes + pbytes))

    kernel = functools.partial(encoder_block_kernel, n_heads=n_heads,
                               d_head=d_head, block_b=block_b, seq_len=S)

    return pl.pallas_call(
        kernel,
        out_shape=jax.ShapeDtypeStruct((B, S, D), x.dtype),
        grid=grid,
        in_specs=in_specs,
        out_specs=out_specs,
        compiler_params=pltpu.CompilerParams(
            dimension_semantics=("parallel",),
            vmem_limit_bytes=vmem_limit),
        cost_estimate=cost,
    )(x, wq_h, bq_h, wk_h, bk_h, wv_h, bv_h, w0_h, b0, g1, be1,
      w1_t, b1, w2_t, b2, g2, be2)


def reference_forward(x, params, n_heads, matmul_dtype=None):
    """Pure-JAX reference (eval mode). If matmul_dtype is set, the dot inputs
    are cast the same way the kernel casts them (bf16 MXU / f32 accumulate)."""
    B, S, D = x.shape
    d_head = D // n_heads
    c = (lambda t: t.astype(matmul_dtype)) if matmul_dtype is not None else (lambda t: t)

    def lin(z, w, b):
        return jnp.dot(c(z), c(w.T), preferred_element_type=jnp.float32) + b

    def ln(z, g, b, eps=1e-5):
        mu = z.mean(-1, keepdims=True)
        var = ((z - mu) ** 2).mean(-1, keepdims=True)
        return (z - mu) / jnp.sqrt(var + eps) * g + b

    q = lin(x, params["wq"], params["bq"])
    k = lin(x, params["wk"], params["bk"])
    v = lin(x, params["wv"], params["bv"])
    split = lambda z: z.reshape(B, S, n_heads, d_head).transpose(0, 2, 1, 3)
    qh, kh, vh = split(q), split(k), split(v)
    s = jnp.einsum("bhsd,bhtd->bhst", c(qh), c(kh),
                   preferred_element_type=jnp.float32) / math.sqrt(d_head)
    p = jax.nn.softmax(s, axis=-1)
    att = jnp.einsum("bhst,bhtd->bhsd", c(p), c(vh),
                     preferred_element_type=jnp.float32)
    att = att.transpose(0, 2, 1, 3).reshape(B, S, D)
    mha = lin(att, params["w0"], params["b0"])
    y1 = ln(x + mha, params["g1"], params["be1"])
    h1 = jax.nn.relu(lin(y1, params["w1"], params["b1"]))
    ffn = lin(h1, params["w2"], params["b2"])
    return ln(y1 + ffn, params["g2"], params["be2"])


if __name__ == "__main__":
    # Small config consistent with the module.
    batch, seq, d_model, n_heads, d_ff = 2, 8, 32, 4, 64

    key = jax.random.PRNGKey(0)
    keys = jax.random.split(key, 13)

    def linear_init(kw, kb, out_f, in_f):
        bound = 1.0 / math.sqrt(in_f)
        w = jax.random.uniform(kw, (out_f, in_f), jnp.float32, -bound, bound)
        b = jax.random.uniform(kb, (out_f,), jnp.float32, -bound, bound)
        return w, b

    wq, bq = linear_init(keys[0], keys[1], d_model, d_model)
    wk, bk = linear_init(keys[2], keys[3], d_model, d_model)
    wv, bv = linear_init(keys[4], keys[5], d_model, d_model)
    w0, b0 = linear_init(keys[6], keys[7], d_model, d_model)
    w1, b1 = linear_init(keys[8], keys[9], d_ff, d_model)
    w2, b2 = linear_init(keys[10], keys[11], d_model, d_ff)

    params = dict(
        wq=wq, bq=bq, wk=wk, bk=bk, wv=wv, bv=bv, w0=w0, b0=b0,
        w1=w1, b1=b1, w2=w2, b2=b2,
        g1=jnp.ones((d_model,), jnp.float32), be1=jnp.zeros((d_model,), jnp.float32),
        g2=jnp.ones((d_model,), jnp.float32), be2=jnp.zeros((d_model,), jnp.float32),
    )

    x = jax.random.normal(keys[12], (batch, seq, d_model), dtype=jnp.float32)

    out = transformer_encoder_block(x, params, n_heads=n_heads)
    out = jax.block_until_ready(out)

    # Validate against a precision-matched reference (bf16 MXU inputs, f32
    # accumulation) — small residual difference comes from the EUP approx
    # reciprocal in the softmax normalization.
    ref = reference_forward(x, params, n_heads, matmul_dtype=jnp.bfloat16)
    assert out.shape == (batch, seq, d_model)
    err = float(jnp.max(jnp.abs(out - ref)))
    assert err < 1e-2, err

    print("KERNEL_OK")
</pallas_src>

<mosaic_0001>
module attributes {stable_mosaic.version = 11 : i64} {
  func.func @encoder_block_kernel(%arg0: i32, %arg1: memref<1x8x32xf32, #tpu.memory_space<vmem>>, %arg2: memref<4x32x8xbf16, #tpu.memory_space<vmem>>, %arg3: memref<4x1x8xf32, #tpu.memory_space<vmem>>, %arg4: memref<4x32x8xbf16, #tpu.memory_space<vmem>>, %arg5: memref<4x1x8xf32, #tpu.memory_space<vmem>>, %arg6: memref<4x32x8xbf16, #tpu.memory_space<vmem>>, %arg7: memref<4x1x8xf32, #tpu.memory_space<vmem>>, %arg8: memref<4x8x32xbf16, #tpu.memory_space<vmem>>, %arg9: memref<1x32xf32, #tpu.memory_space<vmem>>, %arg10: memref<1x32xf32, #tpu.memory_space<vmem>>, %arg11: memref<1x32xf32, #tpu.memory_space<vmem>>, %arg12: memref<32x64xbf16, #tpu.memory_space<vmem>>, %arg13: memref<1x64xf32, #tpu.memory_space<vmem>>, %arg14: memref<64x32xbf16, #tpu.memory_space<vmem>>, %arg15: memref<1x32xf32, #tpu.memory_space<vmem>>, %arg16: memref<1x32xf32, #tpu.memory_space<vmem>>, %arg17: memref<1x32xf32, #tpu.memory_space<vmem>>, %arg18: memref<1x8x32xf32, #tpu.memory_space<vmem>>) attributes {dimension_semantics = [#tpu.dimension_semantics<parallel>], iteration_bounds = array<i64: 2>, scalar_prefetch = 0 : i64, scratch_operands = 0 : i64, tpu.core_type = #tpu.core_type<tc>, window_params = [{transform_indices = @transform_0, window_bounds = array<i64: 1, 8, 32>}, {pipeline_mode = #tpu.pipeline_mode<synchronous>, transform_indices = @transform_1, window_bounds = array<i64: 4, 32, 8>}, {pipeline_mode = #tpu.pipeline_mode<synchronous>, transform_indices = @transform_2, window_bounds = array<i64: 4, 1, 8>}, {pipeline_mode = #tpu.pipeline_mode<synchronous>, transform_indices = @transform_3, window_bounds = array<i64: 4, 32, 8>}, {pipeline_mode = #tpu.pipeline_mode<synchronous>, transform_indices = @transform_4, window_bounds = array<i64: 4, 1, 8>}, {pipeline_mode = #tpu.pipeline_mode<synchronous>, transform_indices = @transform_5, window_bounds = array<i64: 4, 32, 8>}, {pipeline_mode = #tpu.pipeline_mode<synchronous>, transform_indices = @transform_6, window_bounds = array<i64: 4, 1, 8>}, {pipeline_mode = #tpu.pipeline_mode<synchronous>, transform_indices = @transform_7, window_bounds = array<i64: 4, 8, 32>}, {pipeline_mode = #tpu.pipeline_mode<synchronous>, transform_indices = @transform_8, window_bounds = array<i64: 1, 32>}, {pipeline_mode = #tpu.pipeline_mode<synchronous>, transform_indices = @transform_9, window_bounds = array<i64: 1, 32>}, {pipeline_mode = #tpu.pipeline_mode<synchronous>, transform_indices = @transform_10, window_bounds = array<i64: 1, 32>}, {pipeline_mode = #tpu.pipeline_mode<synchronous>, transform_indices = @transform_11, window_bounds = array<i64: 32, 64>}, {pipeline_mode = #tpu.pipeline_mode<synchronous>, transform_indices = @transform_12, window_bounds = array<i64: 1, 64>}, {pipeline_mode = #tpu.pipeline_mode<synchronous>, transform_indices = @transform_13, window_bounds = array<i64: 64, 32>}, {pipeline_mode = #tpu.pipeline_mode<synchronous>, transform_indices = @transform_14, window_bounds = array<i64: 1, 32>}, {pipeline_mode = #tpu.pipeline_mode<synchronous>, transform_indices = @transform_15, window_bounds = array<i64: 1, 32>}, {pipeline_mode = #tpu.pipeline_mode<synchronous>, transform_indices = @transform_16, window_bounds = array<i64: 1, 32>}, {transform_indices = @transform_17, window_bounds = array<i64: 1, 8, 32>}]} {
    %c0 = arith.constant 0 : index
    %c0_0 = arith.constant 0 : index
    %c0_1 = arith.constant 0 : index
    %0 = vector.load %arg1[%c0, %c0_0, %c0_1] : memref<1x8x32xf32, #tpu.memory_space<vmem>>, vector<1x8x32xf32>
    %1 = vector.shape_cast %0 : vector<1x8x32xf32> to vector<8x32xf32>
    %2 = arith.truncf %1 : vector<8x32xf32> to vector<8x32xbf16>
    %cst = arith.constant 0.000000e+00 : f32
    %3 = vector.broadcast %cst : f32 to vector<8x32xf32>
    %c0_2 = arith.constant 0 : index
    %c0_3 = arith.constant 0 : index
    %c0_4 = arith.constant 0 : index
    %4 = vector.load %arg2[%c0_2, %c0_3, %c0_4] : memref<4x32x8xbf16, #tpu.memory_space<vmem>>, vector<1x32x8xbf16>
    %5 = vector.shape_cast %4 : vector<1x32x8xbf16> to vector<32x8xbf16>
    %cst_5 = arith.constant dense<0.000000e+00> : vector<8x8xf32>
    %6 = tpu.matmul %2, %5, %cst_5 {dimension_numbers = #tpu.dot_dimension_numbers<[1], [0], [0], [1], [0, 0, 1, 1], [], []>} : vector<8x32xbf16>, vector<32x8xbf16>, vector<8x8xf32> -> vector<8x8xf32>
    %c0_6 = arith.constant 0 : index
    %c0_7 = arith.constant 0 : index
    %c0_8 = arith.constant 0 : index
    %7 = vector.load %arg3[%c0_6, %c0_7, %c0_8] : memref<4x1x8xf32, #tpu.memory_space<vmem>>, vector<1x1x8xf32>
    %8 = vector.shape_cast %7 : vector<1x1x8xf32> to vector<1x8xf32>
    %9 = vector.broadcast %8 : vector<1x8xf32> to vector<8x8xf32>
    %10 = arith.addf %6, %9 : vector<8x8xf32>
    %c0_9 = arith.constant 0 : index
    %c0_10 = arith.constant 0 : index
    %c0_11 = arith.constant 0 : index
    %11 = vector.load %arg4[%c0_9, %c0_10, %c0_11] : memref<4x32x8xbf16, #tpu.memory_space<vmem>>, vector<1x32x8xbf16>
    %12 = vector.shape_cast %11 : vector<1x32x8xbf16> to vector<32x8xbf16>
    %cst_12 = arith.constant dense<0.000000e+00> : vector<8x8xf32>
    %13 = tpu.matmul %2, %12, %cst_12 {dimension_numbers = #tpu.dot_dimension_numbers<[1], [0], [0], [1], [0, 0, 1, 1], [], []>} : vector<8x32xbf16>, vector<32x8xbf16>, vector<8x8xf32> -> vector<8x8xf32>
    %c0_13 = arith.constant 0 : index
    %c0_14 = arith.constant 0 : index
    %c0_15 = arith.constant 0 : index
    %14 = vector.load %arg5[%c0_13, %c0_14, %c0_15] : memref<4x1x8xf32, #tpu.memory_space<vmem>>, vector<1x1x8xf32>
    %15 = vector.shape_cast %14 : vector<1x1x8xf32> to vector<1x8xf32>
    %16 = vector.broadcast %15 : vector<1x8xf32> to vector<8x8xf32>
    %17 = arith.addf %13, %16 : vector<8x8xf32>
    %c0_16 = arith.constant 0 : index
    %c0_17 = arith.constant 0 : index
    %c0_18 = arith.constant 0 : index
    %18 = vector.load %arg6[%c0_16, %c0_17, %c0_18] : memref<4x32x8xbf16, #tpu.memory_space<vmem>>, vector<1x32x8xbf16>
    %19 = vector.shape_cast %18 : vector<1x32x8xbf16> to vector<32x8xbf16>
    %cst_19 = arith.constant dense<0.000000e+00> : vector<8x8xf32>
    %20 = tpu.matmul %2, %19, %cst_19 {dimension_numbers = #tpu.dot_dimension_numbers<[1], [0], [0], [1], [0, 0, 1, 1], [], []>} : vector<8x32xbf16>, vector<32x8xbf16>, vector<8x8xf32> -> vector<8x8xf32>
    %c0_20 = arith.constant 0 : index
    %c0_21 = arith.constant 0 : index
    %c0_22 = arith.constant 0 : index
    %21 = vector.load %arg7[%c0_20, %c0_21, %c0_22] : memref<4x1x8xf32, #tpu.memory_space<vmem>>, vector<1x1x8xf32>
    %22 = vector.shape_cast %21 : vector<1x1x8xf32> to vector<1x8xf32>
    %23 = vector.broadcast %22 : vector<1x8xf32> to vector<8x8xf32>
    %24 = arith.addf %20, %23 : vector<8x8xf32>
    %25 = vector.shape_cast %10 : vector<8x8xf32> to vector<1x8x8xf32>
    %26 = vector.shape_cast %17 : vector<8x8xf32> to vector<1x8x8xf32>
    %27 = vector.shape_cast %24 : vector<8x8xf32> to vector<1x8x8xf32>
    %28 = arith.truncf %25 : vector<1x8x8xf32> to vector<1x8x8xbf16>
    %29 = arith.truncf %26 : vector<1x8x8xf32> to vector<1x8x8xbf16>
    "tpu.trace_start"() <{level = 10 : i32, message = "bqd,bkd->bqk"}> : () -> ()
    %cst_23 = arith.constant dense<0.000000e+00> : vector<1x8x8xf32>
    %30 = tpu.matmul %28, %29, %cst_23 {dimension_numbers = #tpu.dot_dimension_numbers<[2], [2], [1], [1], [0, 0, 0, 1, 1, 1], [0], [0]>} : vector<1x8x8xbf16>, vector<1x8x8xbf16>, vector<1x8x8xf32> -> vector<1x8x8xf32>
    "tpu.trace_stop"() : () -> ()
    %cst_24 = arith.constant 0.353553385 : f32
    %31 = vector.broadcast %cst_24 : f32 to vector<1x8x8xf32>
    %32 = arith.mulf %30, %31 : vector<1x8x8xf32>
    %cst_25 = arith.constant dense<0xFF800000> : vector<1x8xf32>
    %33 = vector.multi_reduction <maximumf>, %32, %cst_25 [2] : vector<1x8x8xf32> to vector<1x8xf32>
    %34 = vector.shape_cast %33 : vector<1x8xf32> to vector<1x8x1xf32>
    %35 = vector.broadcast %34 : vector<1x8x1xf32> to vector<1x8x8xf32>
    %36 = arith.subf %32, %35 : vector<1x8x8xf32>
    %37 = math.exp %36 : vector<1x8x8xf32>
    %cst_26 = arith.constant dense<0.000000e+00> : vector<1x8xf32>
    %38 = vector.multi_reduction <add>, %37, %cst_26 [2] : vector<1x8x8xf32> to vector<1x8xf32>
    %39 = vector.shape_cast %38 : vector<1x8xf32> to vector<1x8x1xf32>
    %40 = tpu.reciprocal %39 {approx = true} : vector<1x8x1xf32> -> vector<1x8x1xf32>
    %41 = vector.broadcast %40 : vector<1x8x1xf32> to vector<1x8x8xf32>
    %42 = arith.mulf %37, %41 : vector<1x8x8xf32>
    %43 = arith.truncf %42 : vector<1x8x8xf32> to vector<1x8x8xbf16>
    %44 = arith.truncf %27 : vector<1x8x8xf32> to vector<1x8x8xbf16>
    "tpu.trace_start"() <{level = 10 : i32, message = "bqk,bkd->bqd"}> : () -> ()
    %cst_27 = arith.constant dense<0.000000e+00> : vector<1x8x8xf32>
    %45 = tpu.matmul %43, %44, %cst_27 {dimension_numbers = #tpu.dot_dimension_numbers<[2], [1], [1], [2], [0, 0, 0, 1, 1, 2], [0], [0]>} : vector<1x8x8xbf16>, vector<1x8x8xbf16>, vector<1x8x8xf32> -> vector<1x8x8xf32>
    "tpu.trace_stop"() : () -> ()
    %46 = vector.shape_cast %45 : vector<1x8x8xf32> to vector<8x8xf32>
    %47 = arith.truncf %46 : vector<8x8xf32> to vector<8x8xbf16>
    %c0_28 = arith.constant 0 : index
    %c0_29 = arith.constant 0 : index
    %c0_30 = arith.constant 0 : index
    %48 = vector.load %arg8[%c0_28, %c0_29, %c0_30] : memref<4x8x32xbf16, #tpu.memory_space<vmem>>, vector<1x8x32xbf16>
    %49 = vector.shape_cast %48 : vector<1x8x32xbf16> to vector<8x32xbf16>
    %cst_31 = arith.constant dense<0.000000e+00> : vector<8x32xf32>
    %50 = tpu.matmul %47, %49, %cst_31 {dimension_numbers = #tpu.dot_dimension_numbers<[1], [0], [0], [1], [0, 0, 1, 1], [], []>} : vector<8x8xbf16>, vector<8x32xbf16>, vector<8x32xf32> -> vector<8x32xf32>
    %51 = arith.addf %3, %50 : vector<8x32xf32>
    %c1 = arith.constant 1 : index
    %c0_32 = arith.constant 0 : index
    %c0_33 = arith.constant 0 : index
    %52 = vector.load %arg2[%c1, %c0_32, %c0_33] : memref<4x32x8xbf16, #tpu.memory_space<vmem>>, vector<1x32x8xbf16>
    %53 = vector.shape_cast %52 : vector<1x32x8xbf16> to vector<32x8xbf16>
    %cst_34 = arith.constant dense<0.000000e+00> : vector<8x8xf32>
    %54 = tpu.matmul %2, %53, %cst_34 {dimension_numbers = #tpu.dot_dimension_numbers<[1], [0], [0], [1], [0, 0, 1, 1], [], []>} : vector<8x32xbf16>, vector<32x8xbf16>, vector<8x8xf32> -> vector<8x8xf32>
    %c1_35 = arith.constant 1 : index
    %c0_36 = arith.constant 0 : index
    %c0_37 = arith.constant 0 : index
    %55 = vector.load %arg3[%c1_35, %c0_36, %c0_37] : memref<4x1x8xf32, #tpu.memory_space<vmem>>, vector<1x1x8xf32>
    %56 = vector.shape_cast %55 : vector<1x1x8xf32> to vector<1x8xf32>
    %57 = vector.broadcast %56 : vector<1x8xf32> to vector<8x8xf32>
    %58 = arith.addf %54, %57 : vector<8x8xf32>
    %c1_38 = arith.constant 1 : index
    %c0_39 = arith.constant 0 : index
    %c0_40 = arith.constant 0 : index
    %59 = vector.load %arg4[%c1_38, %c0_39, %c0_40] : memref<4x32x8xbf16, #tpu.memory_space<vmem>>, vector<1x32x8xbf16>
    %60 = vector.shape_cast %59 : vector<1x32x8xbf16> to vector<32x8xbf16>
    %cst_41 = arith.constant dense<0.000000e+00> : vector<8x8xf32>
    %61 = tpu.matmul %2, %60, %cst_41 {dimension_numbers = #tpu.dot_dimension_numbers<[1], [0], [0], [1], [0, 0, 1, 1], [], []>} : vector<8x32xbf16>, vector<32x8xbf16>, vector<8x8xf32> -> vector<8x8xf32>
    %c1_42 = arith.constant 1 : index
    %c0_43 = arith.constant 0 : index
    %c0_44 = arith.constant 0 : index
    %62 = vector.load %arg5[%c1_42, %c0_43, %c0_44] : memref<4x1x8xf32, #tpu.memory_space<vmem>>, vector<1x1x8xf32>
    %63 = vector.shape_cast %62 : vector<1x1x8xf32> to vector<1x8xf32>
    %64 = vector.broadcast %63 : vector<1x8xf32> to vector<8x8xf32>
    %65 = arith.addf %61, %64 : vector<8x8xf32>
    %c1_45 = arith.constant 1 : index
    %c0_46 = arith.constant 0 : index
    %c0_47 = arith.constant 0 : index
    %66 = vector.load %arg6[%c1_45, %c0_46, %c0_47] : memref<4x32x8xbf16, #tpu.memory_space<vmem>>, vector<1x32x8xbf16>
    %67 = vector.shape_cast %66 : vector<1x32x8xbf16> to vector<32x8xbf16>
    %cst_48 = arith.constant dense<0.000000e+00> : vector<8x8xf32>
    %68 = tpu.matmul %2, %67, %cst_48 {dimension_numbers = #tpu.dot_dimension_numbers<[1], [0], [0], [1], [0, 0, 1, 1], [], []>} : vector<8x32xbf16>, vector<32x8xbf16>, vector<8x8xf32> -> vector<8x8xf32>
    %c1_49 = arith.constant 1 : index
    %c0_50 = arith.constant 0 : index
    %c0_51 = arith.constant 0 : index
    %69 = vector.load %arg7[%c1_49, %c0_50, %c0_51] : memref<4x1x8xf32, #tpu.memory_space<vmem>>, vector<1x1x8xf32>
    %70 = vector.shape_cast %69 : vector<1x1x8xf32> to vector<1x8xf32>
    %71 = vector.broadcast %70 : vector<1x8xf32> to vector<8x8xf32>
    %72 = arith.addf %68, %71 : vector<8x8xf32>
    %73 = vector.shape_cast %58 : vector<8x8xf32> to vector<1x8x8xf32>
    %74 = vector.shape_cast %65 : vector<8x8xf32> to vector<1x8x8xf32>
    %75 = vector.shape_cast %72 : vector<8x8xf32> to vector<1x8x8xf32>
    %76 = arith.truncf %73 : vector<1x8x8xf32> to vector<1x8x8xbf16>
    %77 = arith.truncf %74 : vector<1x8x8xf32> to vector<1x8x8xbf16>
    "tpu.trace_start"() <{level = 10 : i32, message = "bqd,bkd->bqk"}> : () -> ()
    %cst_52 = arith.constant dense<0.000000e+00> : vector<1x8x8xf32>
    %78 = tpu.matmul %76, %77, %cst_52 {dimension_numbers = #tpu.dot_dimension_numbers<[2], [2], [1], [1], [0, 0, 0, 1, 1, 1], [0], [0]>} : vector<1x8x8xbf16>, vector<1x8x8xbf16>, vector<1x8x8xf32> -> vector<1x8x8xf32>
    "tpu.trace_stop"() : () -> ()
    %cst_53 = arith.constant 0.353553385 : f32
    %79 = vector.broadcast %cst_53 : f32 to vector<1x8x8xf32>
    %80 = arith.mulf %78, %79 : vector<1x8x8xf32>
    %cst_54 = arith.constant dense<0xFF800000> : vector<1x8xf32>
    %81 = vector.multi_reduction <maximumf>, %80, %cst_54 [2] : vector<1x8x8xf32> to vector<1x8xf32>
    %82 = vector.shape_cast %81 : vector<1x8xf32> to vector<1x8x1xf32>
    %83 = vector.broadcast %82 : vector<1x8x1xf32> to vector<1x8x8xf32>
    %84 = arith.subf %80, %83 : vector<1x8x8xf32>
    %85 = math.exp %84 : vector<1x8x8xf32>
    %cst_55 = arith.constant dense<0.000000e+00> : vector<1x8xf32>
    %86 = vector.multi_reduction <add>, %85, %cst_55 [2] : vector<1x8x8xf32> to vector<1x8xf32>
    %87 = vector.shape_cast %86 : vector<1x8xf32> to vector<1x8x1xf32>
    %88 = tpu.reciprocal %87 {approx = true} : vector<1x8x1xf32> -> vector<1x8x1xf32>
    %89 = vector.broadcast %88 : vector<1x8x1xf32> to vector<1x8x8xf32>
    %90 = arith.mulf %85, %89 : vector<1x8x8xf32>
    %91 = arith.truncf %90 : vector<1x8x8xf32> to vector<1x8x8xbf16>
    %92 = arith.truncf %75 : vector<1x8x8xf32> to vector<1x8x8xbf16>
    "tpu.trace_start"() <{level = 10 : i32, message = "bqk,bkd->bqd"}> : () -> ()
    %cst_56 = arith.constant dense<0.000000e+00> : vector<1x8x8xf32>
    %93 = tpu.matmul %91, %92, %cst_56 {dimension_numbers = #tpu.dot_dimension_numbers<[2], [1], [1], [2], [0, 0, 0, 1, 1, 2], [0], [0]>} : vector<1x8x8xbf16>, vector<1x8x8xbf16>, vector<1x8x8xf32> -> vector<1x8x8xf32>
    "tpu.trace_stop"() : () -> ()
    %94 = vector.shape_cast %93 : vector<1x8x8xf32> to vector<8x8xf32>
    %95 = arith.truncf %94 : vector<8x8xf32> to vector<8x8xbf16>
    %c1_57 = arith.constant 1 : index
    %c0_58 = arith.constant 0 : index
    %c0_59 = arith.constant 0 : index
    %96 = vector.load %arg8[%c1_57, %c0_58, %c0_59] : memref<4x8x32xbf16, #tpu.memory_space<vmem>>, vector<1x8x32xbf16>
    %97 = vector.shape_cast %96 : vector<1x8x32xbf16> to vector<8x32xbf16>
    %cst_60 = arith.constant dense<0.000000e+00> : vector<8x32xf32>
    %98 = tpu.matmul %95, %97, %cst_60 {dimension_numbers = #tpu.dot_dimension_numbers<[1], [0], [0], [1], [0, 0, 1, 1], [], []>} : vector<8x8xbf16>, vector<8x32xbf16>, vector<8x32xf32> -> vector<8x32xf32>
    %99 = arith.addf %51, %98 : vector<8x32xf32>
    %c2 = arith.constant 2 : index
    %c0_61 = arith.constant 0 : index
    %c0_62 = arith.constant 0 : index
    %100 = vector.load %arg2[%c2, %c0_61, %c0_62] : memref<4x32x8xbf16, #tpu.memory_space<vmem>>, vector<1x32x8xbf16>
    %101 = vector.shape_cast %100 : vector<1x32x8xbf16> to vector<32x8xbf16>
    %cst_63 = arith.constant dense<0.000000e+00> : vector<8x8xf32>
    %102 = tpu.matmul %2, %101, %cst_63 {dimension_numbers = #tpu.dot_dimension_numbers<[1], [0], [0], [1], [0, 0, 1, 1], [], []>} : vector<8x32xbf16>, vector<32x8xbf16>, vector<8x8xf32> -> vector<8x8xf32>
    %c2_64 = arith.constant 2 : index
    %c0_65 = arith.constant 0 : index
    %c0_66 = arith.constant 0 : index
    %103 = vector.load %arg3[%c2_64, %c0_65, %c0_66] : memref<4x1x8xf32, #tpu.memory_space<vmem>>, vector<1x1x8xf32>
    %104 = vector.shape_cast %103 : vector<1x1x8xf32> to vector<1x8xf32>
    %105 = vector.broadcast %104 : vector<1x8xf32> to vector<8x8xf32>
    %106 = arith.addf %102, %105 : vector<8x8xf32>
    %c2_67 = arith.constant 2 : index
    %c0_68 = arith.constant 0 : index
    %c0_69 = arith.constant 0 : index
    %107 = vector.load %arg4[%c2_67, %c0_68, %c0_69] : memref<4x32x8xbf16, #tpu.memory_space<vmem>>, vector<1x32x8xbf16>
    %108 = vector.shape_cast %107 : vector<1x32x8xbf16> to vector<32x8xbf16>
    %cst_70 = arith.constant dense<0.000000e+00> : vector<8x8xf32>
    %109 = tpu.matmul %2, %108, %cst_70 {dimension_numbers = #tpu.dot_dimension_numbers<[1], [0], [0], [1], [0, 0, 1, 1], [], []>} : vector<8x32xbf16>, vector<32x8xbf16>, vector<8x8xf32> -> vector<8x8xf32>
    %c2_71 = arith.constant 2 : index
    %c0_72 = arith.constant 0 : index
    %c0_73 = arith.constant 0 : index
    %110 = vector.load %arg5[%c2_71, %c0_72, %c0_73] : memref<4x1x8xf32, #tpu.memory_space<vmem>>, vector<1x1x8xf32>
    %111 = vector.shape_cast %110 : vector<1x1x8xf32> to vector<1x8xf32>
    %112 = vector.broadcast %111 : vector<1x8xf32> to vector<8x8xf32>
    %113 = arith.addf %109, %112 : vector<8x8xf32>
    %c2_74 = arith.constant 2 : index
    %c0_75 = arith.constant 0 : index
    %c0_76 = arith.constant 0 : index
    %114 = vector.load %arg6[%c2_74, %c0_75, %c0_76] : memref<4x32x8xbf16, #tpu.memory_space<vmem>>, vector<1x32x8xbf16>
    %115 = vector.shape_cast %114 : vector<1x32x8xbf16> to vector<32x8xbf16>
    %cst_77 = arith.constant dense<0.000000e+00> : vector<8x8xf32>
    %116 = tpu.matmul %2, %115, %cst_77 {dimension_numbers = #tpu.dot_dimension_numbers<[1], [0], [0], [1], [0, 0, 1, 1], [], []>} : vector<8x32xbf16>, vector<32x8xbf16>, vector<8x8xf32> -> vector<8x8xf32>
    %c2_78 = arith.constant 2 : index
    %c0_79 = arith.constant 0 : index
    %c0_80 = arith.constant 0 : index
    %117 = vector.load %arg7[%c2_78, %c0_79, %c0_80] : memref<4x1x8xf32, #tpu.memory_space<vmem>>, vector<1x1x8xf32>
    %118 = vector.shape_cast %117 : vector<1x1x8xf32> to vector<1x8xf32>
    %119 = vector.broadcast %118 : vector<1x8xf32> to vector<8x8xf32>
    %120 = arith.addf %116, %119 : vector<8x8xf32>
    %121 = vector.shape_cast %106 : vector<8x8xf32> to vector<1x8x8xf32>
    %122 = vector.shape_cast %113 : vector<8x8xf32> to vector<1x8x8xf32>
    %123 = vector.shape_cast %120 : vector<8x8xf32> to vector<1x8x8xf32>
    %124 = arith.truncf %121 : vector<1x8x8xf32> to vector<1x8x8xbf16>
    %125 = arith.truncf %122 : vector<1x8x8xf32> to vector<1x8x8xbf16>
    "tpu.trace_start"() <{level = 10 : i32, message = "bqd,bkd->bqk"}> : () -> ()
    %cst_81 = arith.constant dense<0.000000e+00> : vector<1x8x8xf32>
    %126 = tpu.matmul %124, %125, %cst_81 {dimension_numbers = #tpu.dot_dimension_numbers<[2], [2], [1], [1], [0, 0, 0, 1, 1, 1], [0], [0]>} : vector<1x8x8xbf16>, vector<1x8x8xbf16>, vector<1x8x8xf32> -> vector<1x8x8xf32>
    "tpu.trace_stop"() : () -> ()
    %cst_82 = arith.constant 0.353553385 : f32
    %127 = vector.broadcast %cst_82 : f32 to vector<1x8x8xf32>
    %128 = arith.mulf %126, %127 : vector<1x8x8xf32>
    %cst_83 = arith.constant dense<0xFF800000> : vector<1x8xf32>
    %129 = vector.multi_reduction <maximumf>, %128, %cst_83 [2] : vector<1x8x8xf32> to vector<1x8xf32>
    %130 = vector.shape_cast %129 : vector<1x8xf32> to vector<1x8x1xf32>
    %131 = vector.broadcast %130 : vector<1x8x1xf32> to vector<1x8x8xf32>
    %132 = arith.subf %128, %131 : vector<1x8x8xf32>
    %133 = math.exp %132 : vector<1x8x8xf32>
    %cst_84 = arith.constant dense<0.000000e+00> : vector<1x8xf32>
    %134 = vector.multi_reduction <add>, %133, %cst_84 [2] : vector<1x8x8xf32> to vector<1x8xf32>
    %135 = vector.shape_cast %134 : vector<1x8xf32> to vector<1x8x1xf32>
    %136 = tpu.reciprocal %135 {approx = true} : vector<1x8x1xf32> -> vector<1x8x1xf32>
    %137 = vector.broadcast %136 : vector<1x8x1xf32> to vector<1x8x8xf32>
    %138 = arith.mulf %133, %137 : vector<1x8x8xf32>
    %139 = arith.truncf %138 : vector<1x8x8xf32> to vector<1x8x8xbf16>
    %140 = arith.truncf %123 : vector<1x8x8xf32> to vector<1x8x8xbf16>
    "tpu.trace_start"() <{level = 10 : i32, message = "bqk,bkd->bqd"}> : () -> ()
    %cst_85 = arith.constant dense<0.000000e+00> : vector<1x8x8xf32>
    %141 = tpu.matmul %139, %140, %cst_85 {dimension_numbers = #tpu.dot_dimension_numbers<[2], [1], [1], [2], [0, 0, 0, 1, 1, 2], [0], [0]>} : vector<1x8x8xbf16>, vector<1x8x8xbf16>, vector<1x8x8xf32> -> vector<1x8x8xf32>
    "tpu.trace_stop"() : () -> ()
    %142 = vector.shape_cast %141 : vector<1x8x8xf32> to vector<8x8xf32>
    %143 = arith.truncf %142 : vector<8x8xf32> to vector<8x8xbf16>
    %c2_86 = arith.constant 2 : index
    %c0_87 = arith.constant 0 : index
    %c0_88 = arith.constant 0 : index
    %144 = vector.load %arg8[%c2_86, %c0_87, %c0_88] : memref<4x8x32xbf16, #tpu.memory_space<vmem>>, vector<1x8x32xbf16>
    %145 = vector.shape_cast %144 : vector<1x8x32xbf16> to vector<8x32xbf16>
    %cst_89 = arith.constant dense<0.000000e+00> : vector<8x32xf32>
    %146 = tpu.matmul %143, %145, %cst_89 {dimension_numbers = #tpu.dot_dimension_numbers<[1], [0], [0], [1], [0, 0, 1, 1], [], []>} : vector<8x8xbf16>, vector<8x32xbf16>, vector<8x32xf32> -> vector<8x32xf32>
    %147 = arith.addf %99, %146 : vector<8x32xf32>
    %c3 = arith.constant 3 : index
    %c0_90 = arith.constant 0 : index
    %c0_91 = arith.constant 0 : index
    %148 = vector.load %arg2[%c3, %c0_90, %c0_91] : memref<4x32x8xbf16, #tpu.memory_space<vmem>>, vector<1x32x8xbf16>
    %149 = vector.shape_cast %148 : vector<1x32x8xbf16> to vector<32x8xbf16>
    %cst_92 = arith.constant dense<0.000000e+00> : vector<8x8xf32>
    %150 = tpu.matmul %2, %149, %cst_92 {dimension_numbers = #tpu.dot_dimension_numbers<[1], [0], [0], [1], [0, 0, 1, 1], [], []>} : vector<8x32xbf16>, vector<32x8xbf16>, vector<8x8xf32> -> vector<8x8xf32>
    %c3_93 = arith.constant 3 : index
    %c0_94 = arith.constant 0 : index
    %c0_95 = arith.constant 0 : index
    %151 = vector.load %arg3[%c3_93, %c0_94, %c0_95] : memref<4x1x8xf32, #tpu.memory_space<vmem>>, vector<1x1x8xf32>
    %152 = vector.shape_cast %151 : vector<1x1x8xf32> to vector<1x8xf32>
    %153 = vector.broadcast %152 : vector<1x8xf32> to vector<8x8xf32>
    %154 = arith.addf %150, %153 : vector<8x8xf32>
    %c3_96 = arith.constant 3 : index
    %c0_97 = arith.constant 0 : index
    %c0_98 = arith.constant 0 : index
    %155 = vector.load %arg4[%c3_96, %c0_97, %c0_98] : memref<4x32x8xbf16, #tpu.memory_space<vmem>>, vector<1x32x8xbf16>
    %156 = vector.shape_cast %155 : vector<1x32x8xbf16> to vector<32x8xbf16>
    %cst_99 = arith.constant dense<0.000000e+00> : vector<8x8xf32>
    %157 = tpu.matmul %2, %156, %cst_99 {dimension_numbers = #tpu.dot_dimension_numbers<[1], [0], [0], [1], [0, 0, 1, 1], [], []>} : vector<8x32xbf16>, vector<32x8xbf16>, vector<8x8xf32> -> vector<8x8xf32>
    %c3_100 = arith.constant 3 : index
    %c0_101 = arith.constant 0 : index
    %c0_102 = arith.constant 0 : index
    %158 = vector.load %arg5[%c3_100, %c0_101, %c0_102] : memref<4x1x8xf32, #tpu.memory_space<vmem>>, vector<1x1x8xf32>
    %159 = vector.shape_cast %158 : vector<1x1x8xf32> to vector<1x8xf32>
    %160 = vector.broadcast %159 : vector<1x8xf32> to vector<8x8xf32>
    %161 = arith.addf %157, %160 : vector<8x8xf32>
    %c3_103 = arith.constant 3 : index
    %c0_104 = arith.constant 0 : index
    %c0_105 = arith.constant 0 : index
    %162 = vector.load %arg6[%c3_103, %c0_104, %c0_105] : memref<4x32x8xbf16, #tpu.memory_space<vmem>>, vector<1x32x8xbf16>
    %163 = vector.shape_cast %162 : vector<1x32x8xbf16> to vector<32x8xbf16>
    %cst_106 = arith.constant dense<0.000000e+00> : vector<8x8xf32>
    %164 = tpu.matmul %2, %163, %cst_106 {dimension_numbers = #tpu.dot_dimension_numbers<[1], [0], [0], [1], [0, 0, 1, 1], [], []>} : vector<8x32xbf16>, vector<32x8xbf16>, vector<8x8xf32> -> vector<8x8xf32>
    %c3_107 = arith.constant 3 : index
    %c0_108 = arith.constant 0 : index
    %c0_109 = arith.constant 0 : index
    %165 = vector.load %arg7[%c3_107, %c0_108, %c0_109] : memref<4x1x8xf32, #tpu.memory_space<vmem>>, vector<1x1x8xf32>
    %166 = vector.shape_cast %165 : vector<1x1x8xf32> to vector<1x8xf32>
    %167 = vector.broadcast %166 : vector<1x8xf32> to vector<8x8xf32>
    %168 = arith.addf %164, %167 : vector<8x8xf32>
    %169 = vector.shape_cast %154 : vector<8x8xf32> to vector<1x8x8xf32>
    %170 = vector.shape_cast %161 : vector<8x8xf32> to vector<1x8x8xf32>
    %171 = vector.shape_cast %168 : vector<8x8xf32> to vector<1x8x8xf32>
    %172 = arith.truncf %169 : vector<1x8x8xf32> to vector<1x8x8xbf16>
    %173 = arith.truncf %170 : vector<1x8x8xf32> to vector<1x8x8xbf16>
    "tpu.trace_start"() <{level = 10 : i32, message = "bqd,bkd->bqk"}> : () -> ()
    %cst_110 = arith.constant dense<0.000000e+00> : vector<1x8x8xf32>
    %174 = tpu.matmul %172, %173, %cst_110 {dimension_numbers = #tpu.dot_dimension_numbers<[2], [2], [1], [1], [0, 0, 0, 1, 1, 1], [0], [0]>} : vector<1x8x8xbf16>, vector<1x8x8xbf16>, vector<1x8x8xf32> -> vector<1x8x8xf32>
    "tpu.trace_stop"() : () -> ()
    %cst_111 = arith.constant 0.353553385 : f32
    %175 = vector.broadcast %cst_111 : f32 to vector<1x8x8xf32>
    %176 = arith.mulf %174, %175 : vector<1x8x8xf32>
    %cst_112 = arith.constant dense<0xFF800000> : vector<1x8xf32>
    %177 = vector.multi_reduction <maximumf>, %176, %cst_112 [2] : vector<1x8x8xf32> to vector<1x8xf32>
    %178 = vector.shape_cast %177 : vector<1x8xf32> to vector<1x8x1xf32>
    %179 = vector.broadcast %178 : vector<1x8x1xf32> to vector<1x8x8xf32>
    %180 = arith.subf %176, %179 : vector<1x8x8xf32>
    %181 = math.exp %180 : vector<1x8x8xf32>
    %cst_113 = arith.constant dense<0.000000e+00> : vector<1x8xf32>
    %182 = vector.multi_reduction <add>, %181, %cst_113 [2] : vector<1x8x8xf32> to vector<1x8xf32>
    %183 = vector.shape_cast %182 : vector<1x8xf32> to vector<1x8x1xf32>
    %184 = tpu.reciprocal %183 {approx = true} : vector<1x8x1xf32> -> vector<1x8x1xf32>
    %185 = vector.broadcast %184 : vector<1x8x1xf32> to vector<1x8x8xf32>
    %186 = arith.mulf %181, %185 : vector<1x8x8xf32>
    %187 = arith.truncf %186 : vector<1x8x8xf32> to vector<1x8x8xbf16>
    %188 = arith.truncf %171 : vector<1x8x8xf32> to vector<1x8x8xbf16>
    "tpu.trace_start"() <{level = 10 : i32, message = "bqk,bkd->bqd"}> : () -> ()
    %cst_114 = arith.constant dense<0.000000e+00> : vector<1x8x8xf32>
    %189 = tpu.matmul %187, %188, %cst_114 {dimension_numbers = #tpu.dot_dimension_numbers<[2], [1], [1], [2], [0, 0, 0, 1, 1, 2], [0], [0]>} : vector<1x8x8xbf16>, vector<1x8x8xbf16>, vector<1x8x8xf32> -> vector<1x8x8xf32>
    "tpu.trace_stop"() : () -> ()
    %190 = vector.shape_cast %189 : vector<1x8x8xf32> to vector<8x8xf32>
    %191 = arith.truncf %190 : vector<8x8xf32> to vector<8x8xbf16>
    %c3_115 = arith.constant 3 : index
    %c0_116 = arith.constant 0 : index
    %c0_117 = arith.constant 0 : index
    %192 = vector.load %arg8[%c3_115, %c0_116, %c0_117] : memref<4x8x32xbf16, #tpu.memory_space<vmem>>, vector<1x8x32xbf16>
    %193 = vector.shape_cast %192 : vector<1x8x32xbf16> to vector<8x32xbf16>
    %cst_118 = arith.constant dense<0.000000e+00> : vector<8x32xf32>
    %194 = tpu.matmul %191, %193, %cst_118 {dimension_numbers = #tpu.dot_dimension_numbers<[1], [0], [0], [1], [0, 0, 1, 1], [], []>} : vector<8x8xbf16>, vector<8x32xbf16>, vector<8x32xf32> -> vector<8x32xf32>
    %195 = arith.addf %147, %194 : vector<8x32xf32>
    %c0_119 = arith.constant 0 : index
    %c0_120 = arith.constant 0 : index
    %196 = vector.load %arg9[%c0_119, %c0_120] : memref<1x32xf32, #tpu.memory_space<vmem>>, vector<1x32xf32>
    %197 = vector.broadcast %196 : vector<1x32xf32> to vector<8x32xf32>
    %198 = arith.addf %195, %197 : vector<8x32xf32>
    %199 = arith.addf %1, %198 : vector<8x32xf32>
    %c0_121 = arith.constant 0 : index
    %c0_122 = arith.constant 0 : index
    %200 = vector.load %arg10[%c0_121, %c0_122] : memref<1x32xf32, #tpu.memory_space<vmem>>, vector<1x32xf32>
    %c0_123 = arith.constant 0 : index
    %c0_124 = arith.constant 0 : index
    %201 = vector.load %arg11[%c0_123, %c0_124] : memref<1x32xf32, #tpu.memory_space<vmem>>, vector<1x32xf32>
    %cst_125 = arith.constant dense<0.000000e+00> : vector<8xf32>
    %202 = vector.multi_reduction <add>, %199, %cst_125 [1] : vector<8x32xf32> to vector<8xf32>
    %203 = vector.shape_cast %202 : vector<8xf32> to vector<8x1xf32>
    %cst_126 = arith.constant 3.200000e+01 : f32
    %204 = vector.broadcast %cst_126 : f32 to vector<8x1xf32>
    %205 = arith.divf %203, %204 : vector<8x1xf32>
    %206 = vector.broadcast %205 : vector<8x1xf32> to vector<8x32xf32>
    %207 = arith.subf %199, %206 : vector<8x32xf32>
    %208 = arith.mulf %207, %207 : vector<8x32xf32>
    %cst_127 = arith.constant dense<0.000000e+00> : vector<8xf32>
    %209 = vector.multi_reduction <add>, %208, %cst_127 [1] : vector<8x32xf32> to vector<8xf32>
    %210 = vector.shape_cast %209 : vector<8xf32> to vector<8x1xf32>
    %cst_128 = arith.constant 3.200000e+01 : f32
    %211 = vector.broadcast %cst_128 : f32 to vector<8x1xf32>
    %212 = arith.divf %210, %211 : vector<8x1xf32>
    %cst_129 = arith.constant 9.99999974E-6 : f32
    %213 = vector.broadcast %cst_129 : f32 to vector<8x1xf32>
    %214 = arith.addf %212, %213 : vector<8x1xf32>
    %215 = math.rsqrt %214 : vector<8x1xf32>
    %216 = vector.broadcast %215 : vector<8x1xf32> to vector<8x32xf32>
    %217 = arith.mulf %207, %216 : vector<8x32xf32>
    %218 = vector.broadcast %200 : vector<1x32xf32> to vector<8x32xf32>
    %219 = arith.mulf %217, %218 : vector<8x32xf32>
    %220 = vector.broadcast %201 : vector<1x32xf32> to vector<8x32xf32>
    %221 = arith.addf %219, %220 : vector<8x32xf32>
    %222 = arith.truncf %221 : vector<8x32xf32> to vector<8x32xbf16>
    %c0_130 = arith.constant 0 : index
    %c0_131 = arith.constant 0 : index
    %223 = vector.load %arg12[%c0_130, %c0_131] : memref<32x64xbf16, #tpu.memory_space<vmem>>, vector<32x64xbf16>
    %cst_132 = arith.constant dense<0.000000e+00> : vector<8x64xf32>
    %224 = tpu.matmul %222, %223, %cst_132 {dimension_numbers = #tpu.dot_dimension_numbers<[1], [0], [0], [1], [0, 0, 1, 1], [], []>} : vector<8x32xbf16>, vector<32x64xbf16>, vector<8x64xf32> -> vector<8x64xf32>
    %c0_133 = arith.constant 0 : index
    %c0_134 = arith.constant 0 : index
    %225 = vector.load %arg13[%c0_133, %c0_134] : memref<1x64xf32, #tpu.memory_space<vmem>>, vector<1x64xf32>
    %226 = vector.broadcast %225 : vector<1x64xf32> to vector<8x64xf32>
    %227 = arith.addf %224, %226 : vector<8x64xf32>
    %cst_135 = arith.constant 0.000000e+00 : f32
    %228 = vector.broadcast %cst_135 : f32 to vector<8x64xf32>
    %229 = arith.maximumf %227, %228 : vector<8x64xf32>
    %230 = arith.truncf %229 : vector<8x64xf32> to vector<8x64xbf16>
    %c0_136 = arith.constant 0 : index
    %c0_137 = arith.constant 0 : index
    %231 = vector.load %arg14[%c0_136, %c0_137] : memref<64x32xbf16, #tpu.memory_space<vmem>>, vector<64x32xbf16>
    %cst_138 = arith.constant dense<0.000000e+00> : vector<8x32xf32>
    %232 = tpu.matmul %230, %231, %cst_138 {dimension_numbers = #tpu.dot_dimension_numbers<[1], [0], [0], [1], [0, 0, 1, 1], [], []>} : vector<8x64xbf16>, vector<64x32xbf16>, vector<8x32xf32> -> vector<8x32xf32>
    %c0_139 = arith.constant 0 : index
    %c0_140 = arith.constant 0 : index
    %233 = vector.load %arg15[%c0_139, %c0_140] : memref<1x32xf32, #tpu.memory_space<vmem>>, vector<1x32xf32>
    %234 = vector.broadcast %233 : vector<1x32xf32> to vector<8x32xf32>
    %235 = arith.addf %232, %234 : vector<8x32xf32>
    %236 = arith.addf %221, %235 : vector<8x32xf32>
    %c0_141 = arith.constant 0 : index
    %c0_142 = arith.constant 0 : index
    %237 = vector.load %arg16[%c0_141, %c0_142] : memref<1x32xf32, #tpu.memory_space<vmem>>, vector<1x32xf32>
    %c0_143 = arith.constant 0 : index
    %c0_144 = arith.constant 0 : index
    %238 = vector.load %arg17[%c0_143, %c0_144] : memref<1x32xf32, #tpu.memory_space<vmem>>, vector<1x32xf32>
    %cst_145 = arith.constant dense<0.000000e+00> : vector<8xf32>
    %239 = vector.multi_reduction <add>, %236, %cst_145 [1] : vector<8x32xf32> to vector<8xf32>
    %240 = vector.shape_cast %239 : vector<8xf32> to vector<8x1xf32>
    %cst_146 = arith.constant 3.200000e+01 : f32
    %241 = vector.broadcast %cst_146 : f32 to vector<8x1xf32>
    %242 = arith.divf %240, %241 : vector<8x1xf32>
    %243 = vector.broadcast %242 : vector<8x1xf32> to vector<8x32xf32>
    %244 = arith.subf %236, %243 : vector<8x32xf32>
    %245 = arith.mulf %244, %244 : vector<8x32xf32>
    %cst_147 = arith.constant dense<0.000000e+00> : vector<8xf32>
    %246 = vector.multi_reduction <add>, %245, %cst_147 [1] : vector<8x32xf32> to vector<8xf32>
    %247 = vector.shape_cast %246 : vector<8xf32> to vector<8x1xf32>
    %cst_148 = arith.constant 3.200000e+01 : f32
    %248 = vector.broadcast %cst_148 : f32 to vector<8x1xf32>
    %249 = arith.divf %247, %248 : vector<8x1xf32>
    %cst_149 = arith.constant 9.99999974E-6 : f32
    %250 = vector.broadcast %cst_149 : f32 to vector<8x1xf32>
    %251 = arith.addf %249, %250 : vector<8x1xf32>
    %252 = math.rsqrt %251 : vector<8x1xf32>
    %253 = vector.broadcast %252 : vector<8x1xf32> to vector<8x32xf32>
    %254 = arith.mulf %244, %253 : vector<8x32xf32>
    %255 = vector.broadcast %237 : vector<1x32xf32> to vector<8x32xf32>
    %256 = arith.mulf %254, %255 : vector<8x32xf32>
    %257 = vector.broadcast %238 : vector<1x32xf32> to vector<8x32xf32>
    %258 = arith.addf %256, %257 : vector<8x32xf32>
    %259 = vector.shape_cast %258 : vector<8x32xf32> to vector<1x8x32xf32>
    %c0_150 = arith.constant 0 : index
    %c0_151 = arith.constant 0 : index
    %c0_152 = arith.constant 0 : index
    %260 = vector.load %arg18[%c0_150, %c0_151, %c0_152] : memref<1x8x32xf32, #tpu.memory_space<vmem>>, vector<1x8x32xf32>
    tpu.vector_store %arg18[%c0_150, %c0_151, %c0_152], %259 {strides = array<i32>} : memref<1x8x32xf32, #tpu.memory_space<vmem>>, vector<1x8x32xf32>,
    return
  }
  func.func @transform_0(%arg0: i32) -> (i32, i32, i32) {
    %c0_i32 = arith.constant 0 : i32
    %c0_i32_0 = arith.constant 0 : i32
    %c0_i32_1 = arith.constant 0 : i32
    return %arg0, %c0_i32, %c0_i32_0 : i32, i32, i32
  }
  func.func @transform_1(%arg0: i32) -> (i32, i32, i32) {
    %c0_i32 = arith.constant 0 : i32
    %c0_i32_0 = arith.constant 0 : i32
    %c0_i32_1 = arith.constant 0 : i32
    %c0_i32_2 = arith.constant 0 : i32
    return %c0_i32, %c0_i32_0, %c0_i32_1 : i32, i32, i32
  }
  func.func @transform_2(%arg0: i32) -> (i32, i32, i32) {
    %c0_i32 = arith.constant 0 : i32
    %c0_i32_0 = arith.constant 0 : i32
    %c0_i32_1 = arith.constant 0 : i32
    %c0_i32_2 = arith.constant 0 : i32
    return %c0_i32, %c0_i32_0, %c0_i32_1 : i32, i32, i32
  }
  func.func @transform_3(%arg0: i32) -> (i32, i32, i32) {
    %c0_i32 = arith.constant 0 : i32
    %c0_i32_0 = arith.constant 0 : i32
    %c0_i32_1 = arith.constant 0 : i32
    %c0_i32_2 = arith.constant 0 : i32
    return %c0_i32, %c0_i32_0, %c0_i32_1 : i32, i32, i32
  }
  func.func @transform_4(%arg0: i32) -> (i32, i32, i32) {
    %c0_i32 = arith.constant 0 : i32
    %c0_i32_0 = arith.constant 0 : i32
    %c0_i32_1 = arith.constant 0 : i32
    %c0_i32_2 = arith.constant 0 : i32
    return %c0_i32, %c0_i32_0, %c0_i32_1 : i32, i32, i32
  }
  func.func @transform_5(%arg0: i32) -> (i32, i32, i32) {
    %c0_i32 = arith.constant 0 : i32
    %c0_i32_0 = arith.constant 0 : i32
    %c0_i32_1 = arith.constant 0 : i32
    %c0_i32_2 = arith.constant 0 : i32
    return %c0_i32, %c0_i32_0, %c0_i32_1 : i32, i32, i32
  }
  func.func @transform_6(%arg0: i32) -> (i32, i32, i32) {
    %c0_i32 = arith.constant 0 : i32
    %c0_i32_0 = arith.constant 0 : i32
    %c0_i32_1 = arith.constant 0 : i32
    %c0_i32_2 = arith.constant 0 : i32
    return %c0_i32, %c0_i32_0, %c0_i32_1 : i32, i32, i32
  }
  func.func @transform_7(%arg0: i32) -> (i32, i32, i32) {
    %c0_i32 = arith.constant 0 : i32
    %c0_i32_0 = arith.constant 0 : i32
    %c0_i32_1 = arith.constant 0 : i32
    %c0_i32_2 = arith.constant 0 : i32
    return %c0_i32, %c0_i32_0, %c0_i32_1 : i32, i32, i32
  }
  func.func @transform_8(%arg0: i32) -> (i32, i32) {
    %c0_i32 = arith.constant 0 : i32
    %c0_i32_0 = arith.constant 0 : i32
    %c0_i32_1 = arith.constant 0 : i32
    return %c0_i32, %c0_i32_0 : i32, i32
  }
  func.func @transform_9(%arg0: i32) -> (i32, i32) {
    %c0_i32 = arith.constant 0 : i32
    %c0_i32_0 = arith.constant 0 : i32
    %c0_i32_1 = arith.constant 0 : i32
    return %c0_i32, %c0_i32_0 : i32, i32
  }
  func.func @transform_10(%arg0: i32) -> (i32, i32) {
    %c0_i32 = arith.constant 0 : i32
    %c0_i32_0 = arith.constant 0 : i32
    %c0_i32_1 = arith.constant 0 : i32
    return %c0_i32, %c0_i32_0 : i32, i32
  }
  func.func @transform_11(%arg0: i32) -> (i32, i32) {
    %c0_i32 = arith.constant 0 : i32
    %c0_i32_0 = arith.constant 0 : i32
    %c0_i32_1 = arith.constant 0 : i32
    return %c0_i32, %c0_i32_0 : i32, i32
  }
  func.func @transform_12(%arg0: i32) -> (i32, i32) {
    %c0_i32 = arith.constant 0 : i32
    %c0_i32_0 = arith.constant 0 : i32
    %c0_i32_1 = arith.constant 0 : i32
    return %c0_i32, %c0_i32_0 : i32, i32
  }
  func.func @transform_13(%arg0: i32) -> (i32, i32) {
    %c0_i32 = arith.constant 0 : i32
    %c0_i32_0 = arith.constant 0 : i32
    %c0_i32_1 = arith.constant 0 : i32
    return %c0_i32, %c0_i32_0 : i32, i32
  }
  func.func @transform_14(%arg0: i32) -> (i32, i32) {
    %c0_i32 = arith.constant 0 : i32
    %c0_i32_0 = arith.constant 0 : i32
    %c0_i32_1 = arith.constant 0 : i32
    return %c0_i32, %c0_i32_0 : i32, i32
  }
  func.func @transform_15(%arg0: i32) -> (i32, i32) {
    %c0_i32 = arith.constant 0 : i32
    %c0_i32_0 = arith.constant 0 : i32
    %c0_i32_1 = arith.constant 0 : i32
    return %c0_i32, %c0_i32_0 : i32, i32
  }
  func.func @transform_16(%arg0: i32) -> (i32, i32) {
    %c0_i32 = arith.constant 0 : i32
    %c0_i32_0 = arith.constant 0 : i32
    %c0_i32_1 = arith.constant 0 : i32
    return %c0_i32, %c0_i32_0 : i32, i32
  }
  func.func @transform_17(%arg0: i32) -> (i32, i32, i32) {
    %c0_i32 = arith.constant 0 : i32
    %c0_i32_0 = arith.constant 0 : i32
    %c0_i32_1 = arith.constant 0 : i32
    return %arg0, %c0_i32, %c0_i32_0 : i32, i32, i32
  }
}

</mosaic_0001>

<llo_original>
// kernel: tpu_custom_call.1
$region0: #{tpu_custom_call.1}
  #allocation0 [shape = 'u32[]', space=smem, size = 0x4, offset = 0x4, fixed_abs, tag = 'smem constant byte address 0x4 - core index']
  #allocation1 [shape = 'u32[144,128]{1,0:T(1,128)}', space=vmem, size = 0x12000, scoped, tag = 'internal scratch']
  %s0 = inlined_call_operand.vmem [shape: f32[2,8,32], index: 0, kind: input, shape index: {}]
  %s1 = inlined_call_operand.vmem [shape: bf16[4,32,8], index: 1, kind: input, shape index: {}]
  %s2 = inlined_call_operand.vmem [shape: f32[4,1,8], index: 2, kind: input, shape index: {}]
  %s3 = inlined_call_operand.vmem [shape: bf16[4,32,8], index: 3, kind: input, shape index: {}]
  %s4 = inlined_call_operand.vmem [shape: f32[4,1,8], index: 4, kind: input, shape index: {}]
  %s5 = inlined_call_operand.vmem [shape: bf16[4,32,8], index: 5, kind: input, shape index: {}]
  %s6 = inlined_call_operand.vmem [shape: f32[4,1,8], index: 6, kind: input, shape index: {}]
  %s7 = inlined_call_operand.vmem [shape: bf16[4,8,32], index: 7, kind: input, shape index: {}]
  %s8 = inlined_call_operand.vmem [shape: f32[1,32], index: 8, kind: input, shape index: {}]
  %s9 = inlined_call_operand.vmem [shape: f32[1,32], index: 9, kind: input, shape index: {}]
  %s10 = inlined_call_operand.vmem [shape: f32[1,32], index: 10, kind: input, shape index: {}]
  %s11 = inlined_call_operand.vmem [shape: bf16[32,64], index: 11, kind: input, shape index: {}]
  %s12 = inlined_call_operand.vmem [shape: f32[1,64], index: 12, kind: input, shape index: {}]
  %s13 = inlined_call_operand.vmem [shape: bf16[64,32], index: 13, kind: input, shape index: {}]
  %s14 = inlined_call_operand.vmem [shape: f32[1,32], index: 14, kind: input, shape index: {}]
  %s15 = inlined_call_operand.vmem [shape: f32[1,32], index: 15, kind: input, shape index: {}]
  %s16 = inlined_call_operand.vmem [shape: f32[1,32], index: 16, kind: input, shape index: {}]
  %s17 = inlined_call_operand.hbm [shape: f32[2,8,32], index: 17, kind: output, shape index: {}]
  %s18 = sld [smem:[#allocation0]]
  $region101: #{tpu_custom_call.1} parent=0
    _
  %s20 = ssub.s32 1, %s18
  %s21 = scalar_select 0, %s20, %s18
  $region1: #{tpu_custom_call.1} parent=0
    #allocation2 [shape = 'u8[8192]{0}', space=vmem, size = 0x2000, scoped, tag = 'output window, operand 0']
    #allocation3 [shape = 's32[2]{0}', space=sflag, size = 0x8, scoped, tag = 'scoped memory for tpu_custom_call.1']
    %22 = vsyncpa [#allocation3], 0
    %s23 = scalar_lea.sflag [#allocation3], 1
    %24 = vsyncpa %s23, 0
    loop: start=0, step=1, limit=4
    $region2: #{tpu_custom_call.1} parent=1 // loop_pre_header
      _
    $region3: #{tpu_custom_call.1} parent=1 // loop_header
      %s26 = sphi 0, %s30
      %p27 = scmp.ge.s32.totalorder %s26, 4
      %s36 = sphi 0, %s38
      %s39 = sphi 0, %s36
      %s40 = sphi 0, %s39
      %s56 = sphi 0, %s40
      %s60 = sphi 0, %s60
      %s62 = sphi 0, %s60
      %s63 = sphi 0, %s62
      %s77 = sphi 0, %s63
      %s81 = sphi 0, %s81
      %s83 = sphi 0, %s81
      %s84 = sphi 0, %s83
      %s98 = sphi 0, %s84
      %s102 = sphi 0, %s102
      %s104 = sphi 0, %s102
      %s105 = sphi 0, %s104
      %s119 = sphi 0, %s105
      %s123 = sphi 0, %s123
      %s125 = sphi 0, %s123
      %s126 = sphi 0, %s125
      %s140 = sphi 0, %s126
      %s144 = sphi 0, %s144
      %s146 = sphi 0, %s144
      %s147 = sphi 0, %s146
      %s161 = sphi 0, %s147
      %s165 = sphi 0, %s165
      %s167 = sphi 0, %s165
      %s168 = sphi 0, %s167
      %s182 = sphi 0, %s168
      %s186 = sphi 0, %s186
      %s188 = sphi 0, %s186
      %s189 = sphi 0, %s188
      %s203 = sphi 0, %s189
      %s207 = sphi 0, %s207
      %s209 = sphi 0, %s207
      %s210 = sphi 0, %s209
      %s224 = sphi 0, %s210
      %s228 = sphi 0, %s228
      %s230 = sphi 0, %s228
      %s231 = sphi 0, %s230
      %s245 = sphi 0, %s231
      %s249 = sphi 0, %s249
      %s251 = sphi 0, %s249
      %s252 = sphi 0, %s251
      %s266 = sphi 0, %s252
      %s270 = sphi 0, %s270
      %s272 = sphi 0, %s270
      %s273 = sphi 0, %s272
      %s287 = sphi 0, %s273
      %s291 = sphi 0, %s291
      %s293 = sphi 0, %s291
      %s294 = sphi 0, %s293
      %s308 = sphi 0, %s294
      %s312 = sphi 0, %s312
      %s314 = sphi 0, %s312
      %s315 = sphi 0, %s314
      %s329 = sphi 0, %s315
      %s333 = sphi 0, %s333
      %s335 = sphi 0, %s333
      %s336 = sphi 0, %s335
      %s350 = sphi 0, %s336
      %s354 = sphi 0, %s354
      %s356 = sphi 0, %s354
      %s357 = sphi 0, %s356
      %s371 = sphi 0, %s357
      %s375 = sphi 0, %s375
      %s377 = sphi 0, %s375
      %s378 = sphi 0, %s377
      %s392 = sphi 0, %s378
      %s398 = sphi 0, %s400
      %s401 = sphi 0, %s398
      %s402 = sphi 0, %s401
      %s418 = sphi 0, %s402
    $region4: #{tpu_custom_call.1} parent=1 // loop_header_branch
      %29 = sbr.rel (%p27) target = $region8
    $region5: #{tpu_custom_call.1} parent=1 // loop_body
      %s31 = ssub.s32 %s26, 1
      %s32 = ssub.s32 %s26, 2
      %s33 = sadd.s32 %s26, 1
      %s34 = ssub.s32 %s26, %s33
      %p35 = scmp.eq.s32.totalorder %s34, 0
      %s37 = sadd.s32 %s36, 1
      %s38 = scalar_select %p35, %s36, %s37
      %p41 = pneg %p35
      %p42 = scmp.eq.s32.totalorder %s26, 1
      %p43 = por %p41, %p42
      %p44 = scmp.ne.s32.totalorder %s36, %s39
      %p45 = scmp.eq.s32.totalorder %s26, 0
      %p46 = por %p44, %p45
      %p47 = scmp.ne.s32.totalorder %s36, %s39
      %p48 = scmp.eq.s32.totalorder %s31, 1
      %p49 = por %p47, %p48
      %p50 = scmp.ne.s32.totalorder %s39, %s40
      %p51 = scmp.eq.s32.totalorder %s31, 0
      %p52 = por %p50, %p51
      %p53 = scmp.ne.s32.totalorder %s39, %s40
      %p54 = scmp.eq.s32.totalorder %s32, 1
      %p55 = por %p53, %p54
      %p57 = scmp.ne.s32.totalorder %s40, %s56
      %p58 = scmp.eq.s32.totalorder %s32, 0
      %p59 = por %p57, %p58
      %s61 = sadd.s32 %s60, 1
      %p64 = scmp.eq.s32.totalorder %s26, 1
      %p65 = scmp.ne.s32.totalorder %s60, %s62
      %p66 = scmp.eq.s32.totalorder %s26, 0
      %p67 = por %p65, %p66
      %p68 = scmp.ne.s32.totalorder %s60, %s62
      %p69 = scmp.eq.s32.totalorder %s31, 1
      %p70 = por %p68, %p69
      %p71 = scmp.ne.s32.totalorder %s62, %s63
      %p72 = scmp.eq.s32.totalorder %s31, 0
      %p73 = por %p71, %p72
      %p74 = scmp.ne.s32.totalorder %s62, %s63
      %p75 = scmp.eq.s32.totalorder %s32, 1
      %p76 = por %p74, %p75
      %p78 = scmp.ne.s32.totalorder %s63, %s77
      %p79 = scmp.eq.s32.totalorder %s32, 0
      %p80 = por %p78, %p79
      %s82 = sadd.s32 %s81, 1
      %p85 = scmp.eq.s32.totalorder %s26, 1
      %p86 = scmp.ne.s32.totalorder %s81, %s83
      %p87 = scmp.eq.s32.totalorder %s26, 0
      %p88 = por %p86, %p87
      %p89 = scmp.ne.s32.totalorder %s81, %s83
      %p90 = scmp.eq.s32.totalorder %s31, 1
      %p91 = por %p89, %p90
      %p92 = scmp.ne.s32.totalorder %s83, %s84
      %p93 = scmp.eq.s32.totalorder %s31, 0
      %p94 = por %p92, %p93
      %p95 = scmp.ne.s32.totalorder %s83, %s84
      %p96 = scmp.eq.s32.totalorder %s32, 1
      %p97 = por %p95, %p96
      %p99 = scmp.ne.s32.totalorder %s84, %s98
      %p100 = scmp.eq.s32.totalorder %s32, 0
      %p101 = por %p99, %p100
      %s103 = sadd.s32 %s102, 1
      %p106 = scmp.eq.s32.totalorder %s26, 1
      %p107 = scmp.ne.s32.totalorder %s102, %s104
      %p108 = scmp.eq.s32.totalorder %s26, 0
      %p109 = por %p107, %p108
      %p110 = scmp.ne.s32.totalorder %s102, %s104
      %p111 = scmp.eq.s32.totalorder %s31, 1
      %p112 = por %p110, %p111
      %p113 = scmp.ne.s32.totalorder %s104, %s105
      %p114 = scmp.eq.s32.totalorder %s31, 0
      %p115 = por %p113, %p114
      %p116 = scmp.ne.s32.totalorder %s104, %s105
      %p117 = scmp.eq.s32.totalorder %s32, 1
      %p118 = por %p116, %p117
      %p120 = scmp.ne.s32.totalorder %s105, %s119
      %p121 = scmp.eq.s32.totalorder %s32, 0
      %p122 = por %p120, %p121
      %s124 = sadd.s32 %s123, 1
      %p127 = scmp.eq.s32.totalorder %s26, 1
      %p128 = scmp.ne.s32.totalorder %s123, %s125
      %p129 = scmp.eq.s32.totalorder %s26, 0
      %p130 = por %p128, %p129
      %p131 = scmp.ne.s32.totalorder %s123, %s125
      %p132 = scmp.eq.s32.totalorder %s31, 1
      %p133 = por %p131, %p132
      %p134 = scmp.ne.s32.totalorder %s125, %s126
      %p135 = scmp.eq.s32.totalorder %s31, 0
      %p136 = por %p134, %p135
      %p137 = scmp.ne.s32.totalorder %s125, %s126
      %p138 = scmp.eq.s32.totalorder %s32, 1
      %p139 = por %p137, %p138
      %p141 = scmp.ne.s32.totalorder %s126, %s140
      %p142 = scmp.eq.s32.totalorder %s32, 0
      %p143 = por %p141, %p142
      %s145 = sadd.s32 %s144, 1
      %p148 = scmp.eq.s32.totalorder %s26, 1
      %p149 = scmp.ne.s32.totalorder %s144, %s146
      %p150 = scmp.eq.s32.totalorder %s26, 0
      %p151 = por %p149, %p150
      %p152 = scmp.ne.s32.totalorder %s144, %s146
      %p153 = scmp.eq.s32.totalorder %s31, 1
      %p154 = por %p152, %p153
      %p155 = scmp.ne.s32.totalorder %s146, %s147
      %p156 = scmp.eq.s32.totalorder %s31, 0
      %p157 = por %p155, %p156
      %p158 = scmp.ne.s32.totalorder %s146, %s147
      %p159 = scmp.eq.s32.totalorder %s32, 1
      %p160 = por %p158, %p159
      %p162 = scmp.ne.s32.totalorder %s147, %s161
      %p163 = scmp.eq.s32.totalorder %s32, 0
      %p164 = por %p162, %p163
      %s166 = sadd.s32 %s165, 1
      %p169 = scmp.eq.s32.totalorder %s26, 1
      %p170 = scmp.ne.s32.totalorder %s165, %s167
      %p171 = scmp.eq.s32.totalorder %s26, 0
      %p172 = por %p170, %p171
      %p173 = scmp.ne.s32.totalorder %s165, %s167
      %p174 = scmp.eq.s32.totalorder %s31, 1
      %p175 = por %p173, %p174
      %p176 = scmp.ne.s32.totalorder %s167, %s168
      %p177 = scmp.eq.s32.totalorder %s31, 0
      %p178 = por %p176, %p177
      %p179 = scmp.ne.s32.totalorder %s167, %s168
      %p180 = scmp.eq.s32.totalorder %s32, 1
      %p181 = por %p179, %p180
      %p183 = scmp.ne.s32.totalorder %s168, %s182
      %p184 = scmp.eq.s32.totalorder %s32, 0
      %p185 = por %p183, %p184
      %s187 = sadd.s32 %s186, 1
      %p190 = scmp.eq.s32.totalorder %s26, 1
      %p191 = scmp.ne.s32.totalorder %s186, %s188
      %p192 = scmp.eq.s32.totalorder %s26, 0
      %p193 = por %p191, %p192
      %p194 = scmp.ne.s32.totalorder %s186, %s188
      %p195 = scmp.eq.s32.totalorder %s31, 1
      %p196 = por %p194, %p195
      %p197 = scmp.ne.s32.totalorder %s188, %s189
      %p198 = scmp.eq.s32.totalorder %s31, 0
      %p199 = por %p197, %p198
      %p200 = scmp.ne.s32.totalorder %s188, %s189
      %p201 = scmp.eq.s32.totalorder %s32, 1
      %p202 = por %p200, %p201
      %p204 = scmp.ne.s32.totalorder %s189, %s203
      %p205 = scmp.eq.s32.totalorder %s32, 0
      %p206 = por %p204, %p205
      %s208 = sadd.s32 %s207, 1
      %p211 = scmp.eq.s32.totalorder %s26, 1
      %p212 = scmp.ne.s32.totalorder %s207, %s209
      %p213 = scmp.eq.s32.totalorder %s26, 0
      %p214 = por %p212, %p213
      %p215 = scmp.ne.s32.totalorder %s207, %s209
      %p216 = scmp.eq.s32.totalorder %s31, 1
      %p217 = por %p215, %p216
      %p218 = scmp.ne.s32.totalorder %s209, %s210
      %p219 = scmp.eq.s32.totalorder %s31, 0
      %p220 = por %p218, %p219
      %p221 = scmp.ne.s32.totalorder %s209, %s210
      %p222 = scmp.eq.s32.totalorder %s32, 1
      %p223 = por %p221, %p222
      %p225 = scmp.ne.s32.totalorder %s210, %s224
      %p226 = scmp.eq.s32.totalorder %s32, 0
      %p227 = por %p225, %p226
      %s229 = sadd.s32 %s228, 1
      %p232 = scmp.eq.s32.totalorder %s26, 1
      %p233 = scmp.ne.s32.totalorder %s228, %s230
      %p234 = scmp.eq.s32.totalorder %s26, 0
      %p235 = por %p233, %p234
      %p236 = scmp.ne.s32.totalorder %s228, %s230
      %p237 = scmp.eq.s32.totalorder %s31, 1
      %p238 = por %p236, %p237
      %p239 = scmp.ne.s32.totalorder %s230, %s231
      %p240 = scmp.eq.s32.totalorder %s31, 0
      %p241 = por %p239, %p240
      %p242 = scmp.ne.s32.totalorder %s230, %s231
      %p243 = scmp.eq.s32.totalorder %s32, 1
      %p244 = por %p242, %p243
      %p246 = scmp.ne.s32.totalorder %s231, %s245
      %p247 = scmp.eq.s32.totalorder %s32, 0
      %p248 = por %p246, %p247
      %s250 = sadd.s32 %s249, 1
      %p253 = scmp.eq.s32.totalorder %s26, 1
      %p254 = scmp.ne.s32.totalorder %s249, %s251
      %p255 = scmp.eq.s32.totalorder %s26, 0
      %p256 = por %p254, %p255
      %p257 = scmp.ne.s32.totalorder %s249, %s251
      %p258 = scmp.eq.s32.totalorder %s31, 1
      %p259 = por %p257, %p258
      %p260 = scmp.ne.s32.totalorder %s251, %s252
      %p261 = scmp.eq.s32.totalorder %s31, 0
      %p262 = por %p260, %p261
      %p263 = scmp.ne.s32.totalorder %s251, %s252
      %p264 = scmp.eq.s32.totalorder %s32, 1
      %p265 = por %p263, %p264
      %p267 = scmp.ne.s32.totalorder %s252, %s266
      %p268 = scmp.eq.s32.totalorder %s32, 0
      %p269 = por %p267, %p268
      %s271 = sadd.s32 %s270, 1
      %p274 = scmp.eq.s32.totalorder %s26, 1
      %p275 = scmp.ne.s32.totalorder %s270, %s272
      %p276 = scmp.eq.s32.totalorder %s26, 0
      %p277 = por %p275, %p276
      %p278 = scmp.ne.s32.totalorder %s270, %s272
      %p279 = scmp.eq.s32.totalorder %s31, 1
      %p280 = por %p278, %p279
      %p281 = scmp.ne.s32.totalorder %s272, %s273
      %p282 = scmp.eq.s32.totalorder %s31, 0
      %p283 = por %p281, %p282
      %p284 = scmp.ne.s32.totalorder %s272, %s273
      %p285 = scmp.eq.s32.totalorder %s32, 1
      %p286 = por %p284, %p285
      %p288 = scmp.ne.s32.totalorder %s273, %s287
      %p289 = scmp.eq.s32.totalorder %s32, 0
      %p290 = por %p288, %p289
      %s292 = sadd.s32 %s291, 1
      %p295 = scmp.eq.s32.totalorder %s26, 1
      %p296 = scmp.ne.s32.totalorder %s291, %s293
      %p297 = scmp.eq.s32.totalorder %s26, 0
      %p298 = por %p296, %p297
      %p299 = scmp.ne.s32.totalorder %s291, %s293
      %p300 = scmp.eq.s32.totalorder %s31, 1
      %p301 = por %p299, %p300
      %p302 = scmp.ne.s32.totalorder %s293, %s294
      %p303 = scmp.eq.s32.totalorder %s31, 0
      %p304 = por %p302, %p303
      %p305 = scmp.ne.s32.totalorder %s293, %s294
      %p306 = scmp.eq.s32.totalorder %s32, 1
      %p307 = por %p305, %p306
      %p309 = scmp.ne.s32.totalorder %s294, %s308
      %p310 = scmp.eq.s32.totalorder %s32, 0
      %p311 = por %p309, %p310
      %s313 = sadd.s32 %s312, 1
      %p316 = scmp.eq.s32.totalorder %s26, 1
      %p317 = scmp.ne.s32.totalorder %s312, %s314
      %p318 = scmp.eq.s32.totalorder %s26, 0
      %p319 = por %p317, %p318
      %p320 = scmp.ne.s32.totalorder %s312, %s314
      %p321 = scmp.eq.s32.totalorder %s31, 1
      %p322 = por %p320, %p321
      %p323 = scmp.ne.s32.totalorder %s314, %s315
      %p324 = scmp.eq.s32.totalorder %s31, 0
      %p325 = por %p323, %p324
      %p326 = scmp.ne.s32.totalorder %s314, %s315
      %p327 = scmp.eq.s32.totalorder %s32, 1
      %p328 = por %p326, %p327
      %p330 = scmp.ne.s32.totalorder %s315, %s329
      %p331 = scmp.eq.s32.totalorder %s32, 0
      %p332 = por %p330, %p331
      %s334 = sadd.s32 %s333, 1
      %p337 = scmp.eq.s32.totalorder %s26, 1
      %p338 = scmp.ne.s32.totalorder %s333, %s335
      %p339 = scmp.eq.s32.totalorder %s26, 0
      %p340 = por %p338, %p339
      %p341 = scmp.ne.s32.totalorder %s333, %s335
      %p342 = scmp.eq.s32.totalorder %s31, 1
      %p343 = por %p341, %p342
      %p344 = scmp.ne.s32.totalorder %s335, %s336
      %p345 = scmp.eq.s32.totalorder %s31, 0
      %p346 = por %p344, %p345
      %p347 = scmp.ne.s32.totalorder %s335, %s336
      %p348 = scmp.eq.s32.totalorder %s32, 1
      %p349 = por %p347, %p348
      %p351 = scmp.ne.s32.totalorder %s336, %s350
      %p352 = scmp.eq.s32.totalorder %s32, 0
      %p353 = por %p351, %p352
      %s355 = sadd.s32 %s354, 1
      %p358 = scmp.eq.s32.totalorder %s26, 1
      %p359 = scmp.ne.s32.totalorder %s354, %s356
      %p360 = scmp.eq.s32.totalorder %s26, 0
      %p361 = por %p359, %p360
      %p362 = scmp.ne.s32.totalorder %s354, %s356
      %p363 = scmp.eq.s32.totalorder %s31, 1
      %p364 = por %p362, %p363
      %p365 = scmp.ne.s32.totalorder %s356, %s357
      %p366 = scmp.eq.s32.totalorder %s31, 0
      %p367 = por %p365, %p366
      %p368 = scmp.ne.s32.totalorder %s356, %s357
      %p369 = scmp.eq.s32.totalorder %s32, 1
      %p370 = por %p368, %p369
      %p372 = scmp.ne.s32.totalorder %s357, %s371
      %p373 = scmp.eq.s32.totalorder %s32, 0
      %p374 = por %p372, %p373
      %s376 = sadd.s32 %s375, 1
      %p379 = scmp.eq.s32.totalorder %s26, 1
      %p380 = scmp.ne.s32.totalorder %s375, %s377
      %p381 = scmp.eq.s32.totalorder %s26, 0
      %p382 = por %p380, %p381
      %p383 = scmp.ne.s32.totalorder %s375, %s377
      %p384 = scmp.eq.s32.totalorder %s31, 1
      %p385 = por %p383, %p384
      %p386 = scmp.ne.s32.totalorder %s377, %s378
      %p387 = scmp.eq.s32.totalorder %s31, 0
      %p388 = por %p386, %p387
      %p389 = scmp.ne.s32.totalorder %s377, %s378
      %p390 = scmp.eq.s32.totalorder %s32, 1
      %p391 = por %p389, %p390
      %p393 = scmp.ne.s32.totalorder %s378, %s392
      %p394 = scmp.eq.s32.totalorder %s32, 0
      %p395 = por %p393, %p394
      %s396 = ssub.s32 %s26, %s33
      %p397 = scmp.eq.s32.totalorder %s396, 0
      %s399 = sadd.s32 %s398, 1
      %s400 = scalar_select %p397, %s398, %s399
      %p403 = pneg %p397
      %p404 = scmp.eq.s32.totalorder %s26, 1
      %p405 = por %p403, %p404
      %p406 = scmp.ne.s32.totalorder %s398, %s401
      %p407 = scmp.eq.s32.totalorder %s26, 0
      %p408 = por %p406, %p407
      %p409 = scmp.ne.s32.totalorder %s398, %s401
      %p410 = scmp.eq.s32.totalorder %s31, 1
      %p411 = por %p409, %p410
      %p412 = scmp.ne.s32.totalorder %s401, %s402
      %p413 = scmp.eq.s32.totalorder %s31, 0
      %p414 = por %p412, %p413
      %p415 = scmp.ne.s32.totalorder %s401, %s402
      %p416 = scmp.eq.s32.totalorder %s32, 1
      %p417 = por %p415, %p416
      %p419 = scmp.ne.s32.totalorder %s402, %s418
      %p420 = scmp.eq.s32.totalorder %s32, 0
      %p421 = por %p419, %p420
      %p422 = scmp.le.s32.totalorder 1, %s26
      %p423 = scmp.lt.s32.totalorder %s26, 3
      %p424 = pnand %p422, %p423
      %p425 = pneg %p424
      // Predicated region
      $region9: #{tpu_custom_call.1} parent=5 // pred_check
        _
      $region10: #{tpu_custom_call.1} parent=5 // pred_check_branch
        %427 = sbr.rel (%p424) target = $region12
      $region11: #{tpu_custom_call.1} parent=5 // pred_region
        %s428 = ssub.s32 %s26, 1
        // Predicated region
        $region13: #{tpu_custom_call.1} parent=11 // pred_check
          %p429 = pneg %p73
        $region14: #{tpu_custom_call.1} parent=11 // pred_check_branch
          %431 = sbr.rel (%p429) target = $region16
        $region15: #{tpu_custom_call.1} parent=11 // pred_region
          _
        $region16: #{tpu_custom_call.1} parent=11 // pred_fallthru
          _
        // Predicated region
        $region17: #{tpu_custom_call.1} parent=11 // pred_check
          %p432 = pneg %p94
        $region18: #{tpu_custom_call.1} parent=11 // pred_check_branch
          %434 = sbr.rel (%p432) target = $region20
        $region19: #{tpu_custom_call.1} parent=11 // pred_region
          _
        $region20: #{tpu_custom_call.1} parent=11 // pred_fallthru
          _
        // Predicated region
        $region21: #{tpu_custom_call.1} parent=11 // pred_check
          %p435 = pneg %p115
        $region22: #{tpu_custom_call.1} parent=11 // pred_check_branch
          %437 = sbr.rel (%p435) target = $region24
        $region23: #{tpu_custom_call.1} parent=11 // pred_region
          _
        $region24: #{tpu_custom_call.1} parent=11 // pred_fallthru
          _
        // Predicated region
        $region25: #{tpu_custom_call.1} parent=11 // pred_check
          %p438 = pneg %p136
        $region26: #{tpu_custom_call.1} parent=11 // pred_check_branch
          %440 = sbr.rel (%p438) target = $region28
        $region27: #{tpu_custom_call.1} parent=11 // pred_region
          _
        $region28: #{tpu_custom_call.1} parent=11 // pred_fallthru
          _
        // Predicated region
        $region29: #{tpu_custom_call.1} parent=11 // pred_check
          %p441 = pneg %p157
        $region30: #{tpu_custom_call.1} parent=11 // pred_check_branch
          %443 = sbr.rel (%p441) target = $region32
        $region31: #{tpu_custom_call.1} parent=11 // pred_region
          _
        $region32: #{tpu_custom_call.1} parent=11 // pred_fallthru
          _
        // Predicated region
        $region33: #{tpu_custom_call.1} parent=11 // pred_check
          %p444 = pneg %p178
        $region34: #{tpu_custom_call.1} parent=11 // pred_check_branch
          %446 = sbr.rel (%p444) target = $region36
        $region35: #{tpu_custom_call.1} parent=11 // pred_region
          _
        $region36: #{tpu_custom_call.1} parent=11 // pred_fallthru
          _
        // Predicated region
        $region37: #{tpu_custom_call.1} parent=11 // pred_check
          %p447 = pneg %p199
        $region38: #{tpu_custom_call.1} parent=11 // pred_check_branch
          %449 = sbr.rel (%p447) target = $region40
        $region39: #{tpu_custom_call.1} parent=11 // pred_region
          _
        $region40: #{tpu_custom_call.1} parent=11 // pred_fallthru
          _
        // Predicated region
        $region41: #{tpu_custom_call.1} parent=11 // pred_check
          %p450 = pneg %p220
        $region42: #{tpu_custom_call.1} parent=11 // pred_check_branch
          %452 = sbr.rel (%p450) target = $region44
        $region43: #{tpu_custom_call.1} parent=11 // pred_region
          _
        $region44: #{tpu_custom_call.1} parent=11 // pred_fallthru
          _
        // Predicated region
        $region45: #{tpu_custom_call.1} parent=11 // pred_check
          %p453 = pneg %p241
        $region46: #{tpu_custom_call.1} parent=11 // pred_check_branch
          %455 = sbr.rel (%p453) target = $region48
        $region47: #{tpu_custom_call.1} parent=11 // pred_region
          _
        $region48: #{tpu_custom_call.1} parent=11 // pred_fallthru
          _
        // Predicated region
        $region49: #{tpu_custom_call.1} parent=11 // pred_check
          %p456 = pneg %p262
        $region50: #{tpu_custom_call.1} parent=11 // pred_check_branch
          %458 = sbr.rel (%p456) target = $region52
        $region51: #{tpu_custom_call.1} parent=11 // pred_region
          _
        $region52: #{tpu_custom_call.1} parent=11 // pred_fallthru
          _
        // Predicated region
        $region53: #{tpu_custom_call.1} parent=11 // pred_check
          %p459 = pneg %p283
        $region54: #{tpu_custom_call.1} parent=11 // pred_check_branch
          %461 = sbr.rel (%p459) target = $region56
        $region55: #{tpu_custom_call.1} parent=11 // pred_region
          _
        $region56: #{tpu_custom_call.1} parent=11 // pred_fallthru
          _
        // Predicated region
        $region57: #{tpu_custom_call.1} parent=11 // pred_check
          %p462 = pneg %p304
        $region58: #{tpu_custom_call.1} parent=11 // pred_check_branch
          %464 = sbr.rel (%p462) target = $region60
        $region59: #{tpu_custom_call.1} parent=11 // pred_region
          _
        $region60: #{tpu_custom_call.1} parent=11 // pred_fallthru
          _
        // Predicated region
        $region61: #{tpu_custom_call.1} parent=11 // pred_check
          %p465 = pneg %p325
        $region62: #{tpu_custom_call.1} parent=11 // pred_check_branch
          %467 = sbr.rel (%p465) target = $region64
        $region63: #{tpu_custom_call.1} parent=11 // pred_region
          _
        $region64: #{tpu_custom_call.1} parent=11 // pred_fallthru
          _
        // Predicated region
        $region65: #{tpu_custom_call.1} parent=11 // pred_check
          %p468 = pneg %p346
        $region66: #{tpu_custom_call.1} parent=11 // pred_check_branch
          %470 = sbr.rel (%p468) target = $region68
        $region67: #{tpu_custom_call.1} parent=11 // pred_region
          _
        $region68: #{tpu_custom_call.1} parent=11 // pred_fallthru
          _
        // Predicated region
        $region69: #{tpu_custom_call.1} parent=11 // pred_check
          %p471 = pneg %p367
        $region70: #{tpu_custom_call.1} parent=11 // pred_check_branch
          %473 = sbr.rel (%p471) target = $region72
        $region71: #{tpu_custom_call.1} parent=11 // pred_region
          _
        $region72: #{tpu_custom_call.1} parent=11 // pred_fallthru
          _
        // Predicated region
        $region73: #{tpu_custom_call.1} parent=11 // pred_check
          %p474 = pneg %p388
        $region74: #{tpu_custom_call.1} parent=11 // pred_check_branch
          %476 = sbr.rel (%p474) target = $region76
        $region75: #{tpu_custom_call.1} parent=11 // pred_region
          _
        $region76: #{tpu_custom_call.1} parent=11 // pred_fallthru
          _
      $region12: #{tpu_custom_call.1} parent=5 // pred_fallthru
        _
      %p477 = scmp.lt.s32.totalorder %s26, 2
      // Predicated region
      $region77: #{tpu_custom_call.1} parent=5 // pred_check
        %p478 = pneg %p477
      $region78: #{tpu_custom_call.1} parent=5 // pred_check_branch
        %480 = sbr.rel (%p478) target = $region80
      $region79: #{tpu_custom_call.1} parent=5 // pred_region
        // Predicated region
        $region81: #{tpu_custom_call.1} parent=79 // pred_check
          %p481 = pneg %p46
        $region82: #{tpu_custom_call.1} parent=79 // pred_check_branch
          %483 = sbr.rel (%p481) target = $region84
        $region83: #{tpu_custom_call.1} parent=79 // pred_region
          %p484 = scmp.lt.s32.totalorder %s26, 1
          %s485 = scalar_select %p484, %s26, 1
          %s486 = smul.addr %s485, 8
          %s487 = scalar_lea.vmem %s0, %s486
        $region84: #{tpu_custom_call.1} parent=79 // pred_fallthru
          _
      $region80: #{tpu_custom_call.1} parent=5 // pred_fallthru
        _
      %p488 = scmp.le.s32.totalorder 1, %s26
      %p489 = scmp.lt.s32.totalorder %s26, 3
      %p490 = pnand %p488, %p489
      %p491 = pneg %p490
      // Predicated region
      $region85: #{tpu_custom_call.1} parent=5 // pred_check
        _
      $region86: #{tpu_custom_call.1} parent=5 // pred_check_branch
        %493 = sbr.rel (%p490) target = $region88
      $region87: #{tpu_custom_call.1} parent=5 // pred_region
        %s494 = ssub.s32 %s26, 1
        %p495 = scmp.lt.s32.totalorder %s31, 1
        %s496 = scalar_select %p495, %s31, 1
        %s497 = smul.addr %s496, 8
        %s498 = scalar_lea.vmem %s0, %s497
        %p499 = pneg %p52
        %p500 = pneg %p49
        %p501 = pneg %p73
        %p502 = pneg %p70
        %p503 = pneg %p94
        %p504 = pneg %p91
        %p505 = pneg %p115
        %p506 = pneg %p112
        %p507 = pneg %p136
        %p508 = pneg %p133
        %p509 = pneg %p157
        %p510 = pneg %p154
        %p511 = pneg %p178
        %p512 = pneg %p175
        %p513 = pneg %p199
        %p514 = pneg %p196
        %p515 = pneg %p220
        %p516 = pneg %p217
        %p517 = pneg %p241
        %p518 = pneg %p238
        %p519 = pneg %p262
        %p520 = pneg %p259
        %p521 = pneg %p283
        %p522 = pneg %p280
        %p523 = pneg %p304
        %p524 = pneg %p301
        %p525 = pneg %p325
        %p526 = pneg %p322
        %p527 = pneg %p346
        %p528 = pneg %p343
        %p529 = pneg %p367
        %p530 = pneg %p364
        %p531 = pneg %p388
        %p532 = pneg %p385
        %p533 = pneg %p414
        %p534 = pneg %p411
        %s535 = sand.u32 %s401, 1
        %s536 = scalar_lea.sflag [#allocation3], %s535
        %s537 = sand.u32 %s401, 1
        %s538 = smul.addr %s537, 8
        %s539 = scalar_lea.vmem [#allocation2], %s538
        %p540 = scmp.lt.s32.totalorder %s31, 1
        %s541 = scalar_select %p540, %s31, 1
        %s542 = smul.addr %s541, 8
        %s543 = scalar_lea.vmem %s0, %s542
        %v545 = vld [vmem:[%s543] sm:$0xff]
        %v546 = vpack.c.bf16 %v545, %v545
        %v547 = vld [vmem:[%s1] sm:$0xf]
        %v548 = vld [vmem:[%s1 + $0x4] sm:$0xf]
        %v549 = vld [vmem:[%s1 + $0x8] sm:$0xf]
        %v550 = vld [vmem:[%s1 + $0xc] sm:$0xf]
        %v551 = vld [vmem:[%s2] sm:$0x1]
        %v553 = vlaneseq
        %v554 = vshrl.u32 %v553, 7
        %v555 = vsub.s32 0, %v554
        %v556 = vrot.slane %v551, %v555
        %v562 = vunpack.c.l.b16 %v547
        %v563 = vunpack.c.l.b16 %v548
        %v564 = vunpack.c.l.b16 %v549
        %v565 = vunpack.c.l.b16 %v550
        %v566 = vpack.c.b16 %v563, %v562
        %v567 = vpack.c.b16 %v565, %v564
        %vm570 = vcmask 261120
        %v572 = vsel %vm570, %v546, 0
        %574 = vmatprep.subr.bf16.mxu0 0
        %575 = vmatpush1.bf16.msra.mxu0 %v566
        %576 = vmatprep.subr.bf16.mxu0 0
        %577 = vmatpush1.bf16.msra.mxu0 %v567
        %578 = vmatprep.subr.bf16.mxu0 0
        %579 = vmatpush1.bf16.msra.mxu0 0
        %580 = vmatprep.subr.bf16.mxu0 0
        %581 = vmatpush1.bf16.msra.mxu0 0
        %582 = vmatprep.subr.bf16.mxu0 0
        %583 = vmatpush1.bf16.msra.mxu0 0
        %584 = vmatprep.subr.bf16.mxu0 0
        %585 = vmatpush1.bf16.msra.mxu0 0
        %586 = vmatprep.subr.bf16.mxu0 0
        %587 = vmatpush1.bf16.msra.mxu0 0
        %588 = vmatprep.subr.bf16.mxu0 0
        %589 = vmatpush1.bf16.msra.mxu0 0
        %590 = vmatprep.subr.bf16.mxu0 0
        %591 = vmatpush1.bf16.msra.mxu0 0
        %592 = vmatprep.subr.bf16.mxu0 0
        %593 = vmatpush1.bf16.msra.mxu0 0
        %594 = vmatprep.subr.bf16.mxu0 0
        %595 = vmatpush1.bf16.msra.mxu0 0
        %596 = vmatprep.subr.bf16.mxu0 0
        %597 = vmatpush1.bf16.msra.mxu0 0
        %598 = vmatprep.subr.bf16.mxu0 0
        %599 = vmatpush1.bf16.msra.mxu0 0
        %600 = vmatprep.subr.bf16.mxu0 0
        %601 = vmatpush1.bf16.msra.mxu0 0
        %602 = vmatprep.subr.bf16.mxu0 0
        %603 = vmatpush1.bf16.msra.mxu0 0
        %604 = vmatprep.subr.bf16.mxu0 0
        %605 = vmatpush1.bf16.msra.mxu0 0
        %606 = vmatprep.mubr.bf16.mxu0 0
        %607 = vmatmul.mubr.bf16.gmra.mrb[0].mxu0 %v572
        %v608 = vpop.f32.mrb[0].mxu0
        %v609 = vadd.f32 %v556, %v608
        %v610 = vpop.f32.mrb[0].mxu0
        %v611 = vpop.f32.mrb[0].mxu0
        %v612 = vpop.f32.mrb[0].mxu0
        %613 = vdwg.mxu0
        %v614 = vld [vmem:[%s3] sm:$0xf]
        %v615 = vld [vmem:[%s3 + $0x4] sm:$0xf]
        %v616 = vld [vmem:[%s3 + $0x8] sm:$0xf]
        %v617 = vld [vmem:[%s3 + $0xc] sm:$0xf]
        %v618 = vld [vmem:[%s4] sm:$0x1]
        %v620 = vlaneseq
        %v621 = vshrl.u32 %v620, 7
        %v622 = vsub.s32 0, %v621
        %v623 = vrot.slane %v618, %v622
        %v629 = vunpack.c.l.b16 %v614
        %v630 = vunpack.c.l.b16 %v615
        %v631 = vunpack.c.l.b16 %v616
        %v632 = vunpack.c.l.b16 %v617
        %v633 = vpack.c.b16 %v630, %v629
        %v634 = vpack.c.b16 %v632, %v631
        %637 = vmatprep.subr.bf16.mxu0 0
        %638 = vmatpush1.bf16.msra.mxu0 %v633
        %639 = vmatprep.subr.bf16.mxu0 0
        %640 = vmatpush1.bf16.msra.mxu0 %v634
        %641 = vmatprep.subr.bf16.mxu0 0
        %642 = vmatpush1.bf16.msra.mxu0 0
        %643 = vmatprep.subr.bf16.mxu0 0
        %644 = vmatpush1.bf16.msra.mxu0 0
        %645 = vmatprep.subr.bf16.mxu0 0
        %646 = vmatpush1.bf16.msra.mxu0 0
        %647 = vmatprep.subr.bf16.mxu0 0
        %648 = vmatpush1.bf16.msra.mxu0 0
        %649 = vmatprep.subr.bf16.mxu0 0
        %650 = vmatpush1.bf16.msra.mxu0 0
        %651 = vmatprep.subr.bf16.mxu0 0
        %652 = vmatpush1.bf16.msra.mxu0 0
        %653 = vmatprep.subr.bf16.mxu0 0
        %654 = vmatpush1.bf16.msra.mxu0 0
        %655 = vmatprep.subr.bf16.mxu0 0
        %656 = vmatpush1.bf16.msra.mxu0 0
        %657 = vmatprep.subr.bf16.mxu0 0
        %658 = vmatpush1.bf16.msra.mxu0 0
        %659 = vmatprep.subr.bf16.mxu0 0
        %660 = vmatpush1.bf16.msra.mxu0 0
        %661 = vmatprep.subr.bf16.mxu0 0
        %662 = vmatpush1.bf16.msra.mxu0 0
        %663 = vmatprep.subr.bf16.mxu0 0
        %664 = vmatpush1.bf16.msra.mxu0 0
        %665 = vmatprep.subr.bf16.mxu0 0
        %666 = vmatpush1.bf16.msra.mxu0 0
        %667 = vmatprep.subr.bf16.mxu0 0
        %668 = vmatpush1.bf16.msra.mxu0 0
        %669 = vmatprep.mubr.bf16.mxu0 0
        %670 = vmatmul.mubr.bf16.gmra.mrb[0].mxu0 %v572
        %v671 = vpop.f32.mrb[0].mxu0
        %v672 = vadd.f32 %v623, %v671
        %v673 = vpop.f32.mrb[0].mxu0
        %v674 = vpop.f32.mrb[0].mxu0
        %v675 = vpop.f32.mrb[0].mxu0
        %676 = vdwg.mxu0
        %v677 = vld [vmem:[%s5] sm:$0xf]
        %v678 = vld [vmem:[%s5 + $0x4] sm:$0xf]
        %v679 = vld [vmem:[%s5 + $0x8] sm:$0xf]
        %v680 = vld [vmem:[%s5 + $0xc] sm:$0xf]
        %v681 = vld [vmem:[%s6] sm:$0x1]
        %v683 = vlaneseq
        %v684 = vshrl.u32 %v683, 7
        %v685 = vsub.s32 0, %v684
        %v686 = vrot.slane %v681, %v685
        %v692 = vunpack.c.l.b16 %v677
        %v693 = vunpack.c.l.b16 %v678
        %v694 = vunpack.c.l.b16 %v679
        %v695 = vunpack.c.l.b16 %v680
        %v696 = vpack.c.b16 %v693, %v692
        %v697 = vpack.c.b16 %v695, %v694
        %700 = vmatprep.subr.bf16.mxu0 0
        %701 = vmatpush1.bf16.msra.mxu0 %v696
        %702 = vmatprep.subr.bf16.mxu0 0
        %703 = vmatpush1.bf16.msra.mxu0 %v697
        %704 = vmatprep.subr.bf16.mxu0 0
        %705 = vmatpush1.bf16.msra.mxu0 0
        %706 = vmatprep.subr.bf16.mxu0 0
        %707 = vmatpush1.bf16.msra.mxu0 0
        %708 = vmatprep.subr.bf16.mxu0 0
        %709 = vmatpush1.bf16.msra.mxu0 0
        %710 = vmatprep.subr.bf16.mxu0 0
        %711 = vmatpush1.bf16.msra.mxu0 0
        %712 = vmatprep.subr.bf16.mxu0 0
        %713 = vmatpush1.bf16.msra.mxu0 0
        %714 = vmatprep.subr.bf16.mxu0 0
        %715 = vmatpush1.bf16.msra.mxu0 0
        %716 = vmatprep.subr.bf16.mxu0 0
        %717 = vmatpush1.bf16.msra.mxu0 0
        %718 = vmatprep.subr.bf16.mxu0 0
        %719 = vmatpush1.bf16.msra.mxu0 0
        %720 = vmatprep.subr.bf16.mxu0 0
        %721 = vmatpush1.bf16.msra.mxu0 0
        %722 = vmatprep.subr.bf16.mxu0 0
        %723 = vmatpush1.bf16.msra.mxu0 0
        %724 = vmatprep.subr.bf16.mxu0 0
        %725 = vmatpush1.bf16.msra.mxu0 0
        %726 = vmatprep.subr.bf16.mxu0 0
        %727 = vmatpush1.bf16.msra.mxu0 0
        %728 = vmatprep.subr.bf16.mxu0 0
        %729 = vmatpush1.bf16.msra.mxu0 0
        %730 = vmatprep.subr.bf16.mxu0 0
        %731 = vmatpush1.bf16.msra.mxu0 0
        %732 = vmatprep.mubr.bf16.mxu0 0
        %733 = vmatmul.mubr.bf16.gmra.mrb[0].mxu0 %v572
        %v734 = vpop.f32.mrb[0].mxu0
        %v735 = vadd.f32 %v686, %v734
        %v736 = vpop.f32.mrb[0].mxu0
        %v737 = vpop.f32.mrb[0].mxu0
        %v738 = vpop.f32.mrb[0].mxu0
        %739 = vdwg.mxu0
        %v740 = vpack.c.bf16 %v609, %v609
        %v741 = vpack.c.bf16 %v672, %v672
        %vm742 = vcmask 64512
        %v744 = vsel %vm742, %v740, 0
        %v747 = vsel %vm742, %v741, 0
        %749 = vmatprep.subr.bf16.mxu0 0
        %750 = vmatpush1.bf16.xpose.msra.mxu0 %v747
        %751 = vmatprep.subr.bf16.mxu0 0
        %752 = vmatpush1.bf16.xpose.msra.mxu0 0
        %753 = vmatprep.subr.bf16.mxu0 0
        %754 = vmatpush1.bf16.xpose.msra.mxu0 0
        %755 = vmatprep.subr.bf16.mxu0 0
        %756 = vmatpush1.bf16.xpose.msra.mxu0 0
        %757 = vmatprep.subr.bf16.mxu0 0
        %758 = vmatpush1.bf16.xpose.msra.mxu0 0
        %759 = vmatprep.subr.bf16.mxu0 0
        %760 = vmatpush1.bf16.xpose.msra.mxu0 0
        %761 = vmatprep.subr.bf16.mxu0 0
        %762 = vmatpush1.bf16.xpose.msra.mxu0 0
        %763 = vmatprep.subr.bf16.mxu0 0
        %764 = vmatpush1.bf16.xpose.msra.mxu0 0
        %765 = vmatprep.subr.bf16.mxu0 0
        %766 = vmatpush1.bf16.xpose.msra.mxu0 0
        %767 = vmatprep.subr.bf16.mxu0 0
        %768 = vmatpush1.bf16.xpose.msra.mxu0 0
        %769 = vmatprep.subr.bf16.mxu0 0
        %770 = vmatpush1.bf16.xpose.msra.mxu0 0
        %771 = vmatprep.subr.bf16.mxu0 0
        %772 = vmatpush1.bf16.xpose.msra.mxu0 0
        %773 = vmatprep.subr.bf16.mxu0 0
        %774 = vmatpush1.bf16.xpose.msra.mxu0 0
        %775 = vmatprep.subr.bf16.mxu0 0
        %776 = vmatpush1.bf16.xpose.msra.mxu0 0
        %777 = vmatprep.subr.bf16.mxu0 0
        %778 = vmatpush1.bf16.xpose.msra.mxu0 0
        %779 = vmatprep.subr.bf16.mxu0 0
        %780 = vmatpush1.bf16.xpose.msra.mxu0 0
        %781 = vmatprep.mubr.bf16.mxu0 0
        %782 = vmatmul.mubr.bf16.gmra.mrb[0].mxu0 %v744
        %v783 = vpop.f32.mrb[0].mxu0
        %v784 = vadd.f32 0.0, %v783
        %v785 = vpop.f32.mrb[0].mxu0
        %v786 = vpop.f32.mrb[0].mxu0
        %v787 = vpop.f32.mrb[0].mxu0
        %788 = vdwg.mxu0
        %v789 = vmul.f32 %v784, 0.35355338
        %v790 = vsel %vm742, %v789, -inf
        %791 = vmax.xlane.f32.xlu0 %v790
        %v792 = vpop.xlane.xlu0 %791
        %v793 = vsub.f32 %v789, %v792
        %v794 = vmul.f32 %v793, 1.442695
        %v795 = vpow.pop %v794
        %v796 = vsel %vm742, %v795, 0.0
        %797 = vadd.xlane.f32.xlu0 %v796
        %v798 = vpop.xlane.xlu0 %797
        %v799 = vrcp.pop %v798
        %v800 = vmul.f32 %v795, %v799
        %v801 = vpack.c.bf16 %v800, %v800
        %v802 = vpack.c.bf16 %v735, %v735
        %v804 = vsel %vm742, %v801, 0
        %vm806 = vcmask 1043456
        %v808 = vsel %vm806, %v802, 0
        %810 = vmatprep.subr.bf16.mxu0 0
        %811 = vmatpush1.bf16.msra.mxu0 %v808
        %812 = vmatprep.subr.bf16.mxu0 0
        %813 = vmatpush1.bf16.msra.mxu0 0
        %814 = vmatprep.subr.bf16.mxu0 0
        %815 = vmatpush1.bf16.msra.mxu0 0
        %816 = vmatprep.subr.bf16.mxu0 0
        %817 = vmatpush1.bf16.msra.mxu0 0
        %818 = vmatprep.subr.bf16.mxu0 0
        %819 = vmatpush1.bf16.msra.mxu0 0
        %820 = vmatprep.subr.bf16.mxu0 0
        %821 = vmatpush1.bf16.msra.mxu0 0
        %822 = vmatprep.subr.bf16.mxu0 0
        %823 = vmatpush1.bf16.msra.mxu0 0
        %824 = vmatprep.subr.bf16.mxu0 0
        %825 = vmatpush1.bf16.msra.mxu0 0
        %826 = vmatprep.subr.bf16.mxu0 0
        %827 = vmatpush1.bf16.msra.mxu0 0
        %828 = vmatprep.subr.bf16.mxu0 0
        %829 = vmatpush1.bf16.msra.mxu0 0
        %830 = vmatprep.subr.bf16.mxu0 0
        %831 = vmatpush1.bf16.msra.mxu0 0
        %832 = vmatprep.subr.bf16.mxu0 0
        %833 = vmatpush1.bf16.msra.mxu0 0
        %834 = vmatprep.subr.bf16.mxu0 0
        %835 = vmatpush1.bf16.msra.mxu0 0
        %836 = vmatprep.subr.bf16.mxu0 0
        %837 = vmatpush1.bf16.msra.mxu0 0
        %838 = vmatprep.subr.bf16.mxu0 0
        %839 = vmatpush1.bf16.msra.mxu0 0
        %840 = vmatprep.subr.bf16.mxu0 0
        %841 = vmatpush1.bf16.msra.mxu0 0
        %842 = vmatprep.mubr.bf16.mxu0 0
        %843 = vmatmul.mubr.bf16.gmra.mrb[0].mxu0 %v804
        %v844 = vpop.f32.mrb[0].mxu0
        %v845 = vadd.f32 0.0, %v844
        %v846 = vpop.f32.mrb[0].mxu0
        %v847 = vpop.f32.mrb[0].mxu0
        %v848 = vpop.f32.mrb[0].mxu0
        %849 = vdwg.mxu0
        %v850 = vpack.c.bf16 %v845, %v845
        %v851 = vld [vmem:[%s7] sm:$0xf]
        %s852 = scalar_lea.vmem %s1, 16
        %v853 = vld [vmem:[%s852] sm:$0xf]
        %v854 = vld [vmem:[%s852 + $0x4] sm:$0xf]
        %v855 = vld [vmem:[%s852 + $0x8] sm:$0xf]
        %v856 = vld [vmem:[%s852 + $0xc] sm:$0xf]
        %s857 = scalar_lea.vmem %s2, 1
        %v858 = vld [vmem:[%s857] sm:$0x1]
        %v860 = vlaneseq
        %v861 = vshrl.u32 %v860, 7
        %v862 = vsub.s32 0, %v861
        %v863 = vrot.slane %v858, %v862
        %v869 = vunpack.c.l.b16 %v853
        %v870 = vunpack.c.l.b16 %v854
        %v871 = vunpack.c.l.b16 %v855
        %v872 = vunpack.c.l.b16 %v856
        %v873 = vpack.c.b16 %v870, %v869
        %v874 = vpack.c.b16 %v872, %v871
        %877 = vmatprep.subr.bf16.mxu0 0
        %878 = vmatpush1.bf16.msra.mxu0 %v873
        %879 = vmatprep.subr.bf16.mxu0 0
        %880 = vmatpush1.bf16.msra.mxu0 %v874
        %881 = vmatprep.subr.bf16.mxu0 0
        %882 = vmatpush1.bf16.msra.mxu0 0
        %883 = vmatprep.subr.bf16.mxu0 0
        %884 = vmatpush1.bf16.msra.mxu0 0
        %885 = vmatprep.subr.bf16.mxu0 0
        %886 = vmatpush1.bf16.msra.mxu0 0
        %887 = vmatprep.subr.bf16.mxu0 0
        %888 = vmatpush1.bf16.msra.mxu0 0
        %889 = vmatprep.subr.bf16.mxu0 0
        %890 = vmatpush1.bf16.msra.mxu0 0
        %891 = vmatprep.subr.bf16.mxu0 0
        %892 = vmatpush1.bf16.msra.mxu0 0
        %893 = vmatprep.subr.bf16.mxu0 0
        %894 = vmatpush1.bf16.msra.mxu0 0
        %895 = vmatprep.subr.bf16.mxu0 0
        %896 = vmatpush1.bf16.msra.mxu0 0
        %897 = vmatprep.subr.bf16.mxu0 0
        %898 = vmatpush1.bf16.msra.mxu0 0
        %899 = vmatprep.subr.bf16.mxu0 0
        %900 = vmatpush1.bf16.msra.mxu0 0
        %901 = vmatprep.subr.bf16.mxu0 0
        %902 = vmatpush1.bf16.msra.mxu0 0
        %903 = vmatprep.subr.bf16.mxu0 0
        %904 = vmatpush1.bf16.msra.mxu0 0
        %905 = vmatprep.subr.bf16.mxu0 0
        %906 = vmatpush1.bf16.msra.mxu0 0
        %907 = vmatprep.subr.bf16.mxu0 0
        %908 = vmatpush1.bf16.msra.mxu0 0
        %909 = vmatprep.mubr.bf16.mxu0 0
        %910 = vmatmul.mubr.bf16.gmra.mrb[0].mxu0 %v572
        %v911 = vpop.f32.mrb[0].mxu0
        %v912 = vadd.f32 %v863, %v911
        %v913 = vpop.f32.mrb[0].mxu0
        %v914 = vpop.f32.mrb[0].mxu0
        %v915 = vpop.f32.mrb[0].mxu0
        %916 = vdwg.mxu0
        %s917 = scalar_lea.vmem %s3, 16
        %v918 = vld [vmem:[%s917] sm:$0xf]
        %v919 = vld [vmem:[%s917 + $0x4] sm:$0xf]
        %v920 = vld [vmem:[%s917 + $0x8] sm:$0xf]
        %v921 = vld [vmem:[%s917 + $0xc] sm:$0xf]
        %s922 = scalar_lea.vmem %s4, 1
        %v923 = vld [vmem:[%s922] sm:$0x1]
        %v925 = vlaneseq
        %v926 = vshrl.u32 %v925, 7
        %v927 = vsub.s32 0, %v926
        %v928 = vrot.slane %v923, %v927
        %v934 = vunpack.c.l.b16 %v918
        %v935 = vunpack.c.l.b16 %v919
        %v936 = vunpack.c.l.b16 %v920
        %v937 = vunpack.c.l.b16 %v921
        %v938 = vpack.c.b16 %v935, %v934
        %v939 = vpack.c.b16 %v937, %v936
        %942 = vmatprep.subr.bf16.mxu0 0
        %943 = vmatpush1.bf16.msra.mxu0 %v938
        %944 = vmatprep.subr.bf16.mxu0 0
        %945 = vmatpush1.bf16.msra.mxu0 %v939
        %946 = vmatprep.subr.bf16.mxu0 0
        %947 = vmatpush1.bf16.msra.mxu0 0
        %948 = vmatprep.subr.bf16.mxu0 0
        %949 = vmatpush1.bf16.msra.mxu0 0
        %950 = vmatprep.subr.bf16.mxu0 0
        %951 = vmatpush1.bf16.msra.mxu0 0
        %952 = vmatprep.subr.bf16.mxu0 0
        %953 = vmatpush1.bf16.msra.mxu0 0
        %954 = vmatprep.subr.bf16.mxu0 0
        %955 = vmatpush1.bf16.msra.mxu0 0
        %956 = vmatprep.subr.bf16.mxu0 0
        %957 = vmatpush1.bf16.msra.mxu0 0
        %958 = vmatprep.subr.bf16.mxu0 0
        %959 = vmatpush1.bf16.msra.mxu0 0
        %960 = vmatprep.subr.bf16.mxu0 0
        %961 = vmatpush1.bf16.msra.mxu0 0
        %962 = vmatprep.subr.bf16.mxu0 0
        %963 = vmatpush1.bf16.msra.mxu0 0
        %964 = vmatprep.subr.bf16.mxu0 0
        %965 = vmatpush1.bf16.msra.mxu0 0
        %966 = vmatprep.subr.bf16.mxu0 0
        %967 = vmatpush1.bf16.msra.mxu0 0
        %968 = vmatprep.subr.bf16.mxu0 0
        %969 = vmatpush1.bf16.msra.mxu0 0
        %970 = vmatprep.subr.bf16.mxu0 0
        %971 = vmatpush1.bf16.msra.mxu0 0
        %972 = vmatprep.subr.bf16.mxu0 0
        %973 = vmatpush1.bf16.msra.mxu0 0
        %974 = vmatprep.mubr.bf16.mxu0 0
        %975 = vmatmul.mubr.bf16.gmra.mrb[0].mxu0 %v572
        %v976 = vpop.f32.mrb[0].mxu0
        %v977 = vadd.f32 %v928, %v976
        %v978 = vpop.f32.mrb[0].mxu0
        %v979 = vpop.f32.mrb[0].mxu0
        %v980 = vpop.f32.mrb[0].mxu0
        %981 = vdwg.mxu0
        %s982 = scalar_lea.vmem %s5, 16
        %v983 = vld [vmem:[%s982] sm:$0xf]
        %v984 = vld [vmem:[%s982 + $0x4] sm:$0xf]
        %v985 = vld [vmem:[%s982 + $0x8] sm:$0xf]
        %v986 = vld [vmem:[%s982 + $0xc] sm:$0xf]
        %s987 = scalar_lea.vmem %s6, 1
        %v988 = vld [vmem:[%s987] sm:$0x1]
        %v990 = vlaneseq
        %v991 = vshrl.u32 %v990, 7
        %v992 = vsub.s32 0, %v991
        %v993 = vrot.slane %v988, %v992
        %v999 = vunpack.c.l.b16 %v983
        %v1000 = vunpack.c.l.b16 %v984
        %v1001 = vunpack.c.l.b16 %v985
        %v1002 = vunpack.c.l.b16 %v986
        %v1003 = vpack.c.b16 %v1000, %v999
        %v1004 = vpack.c.b16 %v1002, %v1001
        %1007 = vmatprep.subr.bf16.mxu0 0
        %1008 = vmatpush1.bf16.msra.mxu0 %v1003
        %1009 = vmatprep.subr.bf16.mxu0 0
        %1010 = vmatpush1.bf16.msra.mxu0 %v1004
        %1011 = vmatprep.subr.bf16.mxu0 0
        %1012 = vmatpush1.bf16.msra.mxu0 0
        %1013 = vmatprep.subr.bf16.mxu0 0
        %1014 = vmatpush1.bf16.msra.mxu0 0
        %1015 = vmatprep.subr.bf16.mxu0 0
        %1016 = vmatpush1.bf16.msra.mxu0 0
        %1017 = vmatprep.subr.bf16.mxu0 0
        %1018 = vmatpush1.bf16.msra.mxu0 0
        %1019 = vmatprep.subr.bf16.mxu0 0
        %1020 = vmatpush1.bf16.msra.mxu0 0
        %1021 = vmatprep.subr.bf16.mxu0 0
        %1022 = vmatpush1.bf16.msra.mxu0 0
        %1023 = vmatprep.subr.bf16.mxu0 0
        %1024 = vmatpush1.bf16.msra.mxu0 0
        %1025 = vmatprep.subr.bf16.mxu0 0
        %1026 = vmatpush1.bf16.msra.mxu0 0
        %1027 = vmatprep.subr.bf16.mxu0 0
        %1028 = vmatpush1.bf16.msra.mxu0 0
        %1029 = vmatprep.subr.bf16.mxu0 0
        %1030 = vmatpush1.bf16.msra.mxu0 0
        %1031 = vmatprep.subr.bf16.mxu0 0
        %1032 = vmatpush1.bf16.msra.mxu0 0
        %1033 = vmatprep.subr.bf16.mxu0 0
        %1034 = vmatpush1.bf16.msra.mxu0 0
        %1035 = vmatprep.subr.bf16.mxu0 0
        %1036 = vmatpush1.bf16.msra.mxu0 0
        %1037 = vmatprep.subr.bf16.mxu0 0
        %1038 = vmatpush1.bf16.msra.mxu0 0
        %1039 = vmatprep.mubr.bf16.mxu0 0
        %1040 = vmatmul.mubr.bf16.gmra.mrb[0].mxu0 %v572
        %v1041 = vpop.f32.mrb[0].mxu0
        %v1042 = vadd.f32 %v993, %v1041
        %v1043 = vpop.f32.mrb[0].mxu0
        %v1044 = vpop.f32.mrb[0].mxu0
        %v1045 = vpop.f32.mrb[0].mxu0
        %1046 = vdwg.mxu0
        %v1047 = vpack.c.bf16 %v912, %v912
        %v1048 = vpack.c.bf16 %v977, %v977
        %v1050 = vsel %vm742, %v1047, 0
        %v1053 = vsel %vm742, %v1048, 0
        %1055 = vmatprep.subr.bf16.mxu0 0
        %1056 = vmatpush1.bf16.xpose.msra.mxu0 %v1053
        %1057 = vmatprep.subr.bf16.mxu0 0
        %1058 = vmatpush1.bf16.xpose.msra.mxu0 0
        %1059 = vmatprep.subr.bf16.mxu0 0
        %1060 = vmatpush1.bf16.xpose.msra.mxu0 0
        %1061 = vmatprep.subr.bf16.mxu0 0
        %1062 = vmatpush1.bf16.xpose.msra.mxu0 0
        %1063 = vmatprep.subr.bf16.mxu0 0
        %1064 = vmatpush1.bf16.xpose.msra.mxu0 0
        %1065 = vmatprep.subr.bf16.mxu0 0
        %1066 = vmatpush1.bf16.xpose.msra.mxu0 0
        %1067 = vmatprep.subr.bf16.mxu0 0
        %1068 = vmatpush1.bf16.xpose.msra.mxu0 0
        %1069 = vmatprep.subr.bf16.mxu0 0
        %1070 = vmatpush1.bf16.xpose.msra.mxu0 0
        %1071 = vmatprep.subr.bf16.mxu0 0
        %1072 = vmatpush1.bf16.xpose.msra.mxu0 0
        %1073 = vmatprep.subr.bf16.mxu0 0
        %1074 = vmatpush1.bf16.xpose.msra.mxu0 0
        %1075 = vmatprep.subr.bf16.mxu0 0
        %1076 = vmatpush1.bf16.xpose.msra.mxu0 0
        %1077 = vmatprep.subr.bf16.mxu0 0
        %1078 = vmatpush1.bf16.xpose.msra.mxu0 0
        %1079 = vmatprep.subr.bf16.mxu0 0
        %1080 = vmatpush1.bf16.xpose.msra.mxu0 0
        %1081 = vmatprep.subr.bf16.mxu0 0
        %1082 = vmatpush1.bf16.xpose.msra.mxu0 0
        %1083 = vmatprep.subr.bf16.mxu0 0
        %1084 = vmatpush1.bf16.xpose.msra.mxu0 0
        %1085 = vmatprep.subr.bf16.mxu0 0
        %1086 = vmatpush1.bf16.xpose.msra.mxu0 0
        %1087 = vmatprep.mubr.bf16.mxu0 0
        %1088 = vmatmul.mubr.bf16.gmra.mrb[0].mxu0 %v1050
        %v1089 = vpop.f32.mrb[0].mxu0
        %v1090 = vadd.f32 0.0, %v1089
        %v1091 = vpop.f32.mrb[0].mxu0
        %v1092 = vpop.f32.mrb[0].mxu0
        %v1093 = vpop.f32.mrb[0].mxu0
        %1094 = vdwg.mxu0
        %v1095 = vmul.f32 %v1090, 0.35355338
        %v1096 = vsel %vm742, %v1095, -inf
        %1097 = vmax.xlane.f32.xlu0 %v1096
        %v1098 = vpop.xlane.xlu0 %1097
        %v1099 = vsub.f32 %v1095, %v1098
        %v1100 = vmul.f32 %v1099, 1.442695
        %v1101 = vpow.pop %v1100
        %v1102 = vsel %vm742, %v1101, 0.0
        %1103 = vadd.xlane.f32.xlu0 %v1102
        %v1104 = vpop.xlane.xlu0 %1103
        %v1105 = vrcp.pop %v1104
        %v1106 = vmul.f32 %v1101, %v1105
        %v1107 = vpack.c.bf16 %v1106, %v1106
        %v1108 = vpack.c.bf16 %v1042, %v1042
        %v1110 = vsel %vm742, %v1107, 0
        %v1113 = vsel %vm806, %v1108, 0
        %1115 = vmatprep.subr.bf16.mxu0 0
        %1116 = vmatpush1.bf16.msra.mxu0 %v1113
        %1117 = vmatprep.subr.bf16.mxu0 0
        %1118 = vmatpush1.bf16.msra.mxu0 0
        %1119 = vmatprep.subr.bf16.mxu0 0
        %1120 = vmatpush1.bf16.msra.mxu0 0
        %1121 = vmatprep.subr.bf16.mxu0 0
        %1122 = vmatpush1.bf16.msra.mxu0 0
        %1123 = vmatprep.subr.bf16.mxu0 0
        %1124 = vmatpush1.bf16.msra.mxu0 0
        %1125 = vmatprep.subr.bf16.mxu0 0
        %1126 = vmatpush1.bf16.msra.mxu0 0
        %1127 = vmatprep.subr.bf16.mxu0 0
        %1128 = vmatpush1.bf16.msra.mxu0 0
        %1129 = vmatprep.subr.bf16.mxu0 0
        %1130 = vmatpush1.bf16.msra.mxu0 0
        %1131 = vmatprep.subr.bf16.mxu0 0
        %1132 = vmatpush1.bf16.msra.mxu0 0
        %1133 = vmatprep.subr.bf16.mxu0 0
        %1134 = vmatpush1.bf16.msra.mxu0 0
        %1135 = vmatprep.subr.bf16.mxu0 0
        %1136 = vmatpush1.bf16.msra.mxu0 0
        %1137 = vmatprep.subr.bf16.mxu0 0
        %1138 = vmatpush1.bf16.msra.mxu0 0
        %1139 = vmatprep.subr.bf16.mxu0 0
        %1140 = vmatpush1.bf16.msra.mxu0 0
        %1141 = vmatprep.subr.bf16.mxu0 0
        %1142 = vmatpush1.bf16.msra.mxu0 0
        %1143 = vmatprep.subr.bf16.mxu0 0
        %1144 = vmatpush1.bf16.msra.mxu0 0
        %1145 = vmatprep.subr.bf16.mxu0 0
        %1146 = vmatpush1.bf16.msra.mxu0 0
        %1147 = vmatprep.mubr.bf16.mxu0 0
        %1148 = vmatmul.mubr.bf16.gmra.mrb[0].mxu0 %v1110
        %v1149 = vpop.f32.mrb[0].mxu0
        %v1150 = vadd.f32 0.0, %v1149
        %v1151 = vpop.f32.mrb[0].mxu0
        %v1152 = vpop.f32.mrb[0].mxu0
        %v1153 = vpop.f32.mrb[0].mxu0
        %1154 = vdwg.mxu0
        %v1155 = vpack.c.bf16 %v1150, %v1150
        %s1156 = scalar_lea.vmem %s7, 4
        %v1157 = vld [vmem:[%s1156] sm:$0xf]
        %v1159 = vsel %vm742, %v1155, 0
        %v1162 = vsel %vm806, %v1157, 0
        %1164 = vmatprep.subr.bf16.mxu0 0
        %1165 = vmatpush1.bf16.msra.mxu0 %v1162
        %1166 = vmatprep.subr.bf16.mxu0 0
        %1167 = vmatpush1.bf16.msra.mxu0 0
        %1168 = vmatprep.subr.bf16.mxu0 0
        %1169 = vmatpush1.bf16.msra.mxu0 0
        %1170 = vmatprep.subr.bf16.mxu0 0
        %1171 = vmatpush1.bf16.msra.mxu0 0
        %1172 = vmatprep.subr.bf16.mxu0 0
        %1173 = vmatpush1.bf16.msra.mxu0 0
        %1174 = vmatprep.subr.bf16.mxu0 0
        %1175 = vmatpush1.bf16.msra.mxu0 0
        %1176 = vmatprep.subr.bf16.mxu0 0
        %1177 = vmatpush1.bf16.msra.mxu0 0
        %1178 = vmatprep.subr.bf16.mxu0 0
        %1179 = vmatpush1.bf16.msra.mxu0 0
        %1180 = vmatprep.subr.bf16.mxu0 0
        %1181 = vmatpush1.bf16.msra.mxu0 0
        %1182 = vmatprep.subr.bf16.mxu0 0
        %1183 = vmatpush1.bf16.msra.mxu0 0
        %1184 = vmatprep.subr.bf16.mxu0 0
        %1185 = vmatpush1.bf16.msra.mxu0 0
        %1186 = vmatprep.subr.bf16.mxu0 0
        %1187 = vmatpush1.bf16.msra.mxu0 0
        %1188 = vmatprep.subr.bf16.mxu0 0
        %1189 = vmatpush1.bf16.msra.mxu0 0
        %1190 = vmatprep.subr.bf16.mxu0 0
        %1191 = vmatpush1.bf16.msra.mxu0 0
        %1192 = vmatprep.subr.bf16.mxu0 0
        %1193 = vmatpush1.bf16.msra.mxu0 0
        %1194 = vmatprep.subr.bf16.mxu0 0
        %1195 = vmatpush1.bf16.msra.mxu0 0
        %1196 = vmatprep.mubr.bf16.mxu0 0
        %1197 = vmatmul.mubr.bf16.gmra.mrb[0].mxu0 %v1159
        %v1198 = vpop.f32.mrb[0].mxu0
        %v1199 = vadd.f32 0.0, %v1198
        %v1200 = vpop.f32.mrb[0].mxu0
        %v1201 = vpop.f32.mrb[0].mxu0
        %v1202 = vpop.f32.mrb[0].mxu0
        %1203 = vdwg.mxu0
        %v1205 = vsel %vm742, %v850, 0
        %v1208 = vsel %vm806, %v851, 0
        %1210 = vmatprep.subr.bf16.mxu0 0
        %1211 = vmatpush1.bf16.msra.mxu0 %v1208
        %1212 = vmatprep.subr.bf16.mxu0 0
        %1213 = vmatpush1.bf16.msra.mxu0 0
        %1214 = vmatprep.subr.bf16.mxu0 0
        %1215 = vmatpush1.bf16.msra.mxu0 0
        %1216 = vmatprep.subr.bf16.mxu0 0
        %1217 = vmatpush1.bf16.msra.mxu0 0
        %1218 = vmatprep.subr.bf16.mxu0 0
        %1219 = vmatpush1.bf16.msra.mxu0 0
        %1220 = vmatprep.subr.bf16.mxu0 0
        %1221 = vmatpush1.bf16.msra.mxu0 0
        %1222 = vmatprep.subr.bf16.mxu0 0
        %1223 = vmatpush1.bf16.msra.mxu0 0
        %1224 = vmatprep.subr.bf16.mxu0 0
        %1225 = vmatpush1.bf16.msra.mxu0 0
        %1226 = vmatprep.subr.bf16.mxu0 0
        %1227 = vmatpush1.bf16.msra.mxu0 0
        %1228 = vmatprep.subr.bf16.mxu0 0
        %1229 = vmatpush1.bf16.msra.mxu0 0
        %1230 = vmatprep.subr.bf16.mxu0 0
        %1231 = vmatpush1.bf16.msra.mxu0 0
        %1232 = vmatprep.subr.bf16.mxu0 0
        %1233 = vmatpush1.bf16.msra.mxu0 0
        %1234 = vmatprep.subr.bf16.mxu0 0
        %1235 = vmatpush1.bf16.msra.mxu0 0
        %1236 = vmatprep.subr.bf16.mxu0 0
        %1237 = vmatpush1.bf16.msra.mxu0 0
        %1238 = vmatprep.subr.bf16.mxu0 0
        %1239 = vmatpush1.bf16.msra.mxu0 0
        %1240 = vmatprep.subr.bf16.mxu0 0
        %1241 = vmatpush1.bf16.msra.mxu0 0
        %1242 = vmatprep.mubr.bf16.mxu0 0
        %1243 = vmatmul.mubr.bf16.gmra.mrb[0].mxu0 %v1205
        %v1244 = vpop.f32.mrb[0].mxu0
        %v1245 = vadd.f32 %v1199, %v1244
        %v1246 = vpop.f32.mrb[0].mxu0
        %v1247 = vpop.f32.mrb[0].mxu0
        %v1248 = vpop.f32.mrb[0].mxu0
        %1249 = vdwg.mxu0
        %s1250 = scalar_lea.vmem %s1, 32
        %v1251 = vld [vmem:[%s1250] sm:$0xf]
        %v1252 = vld [vmem:[%s1250 + $0x4] sm:$0xf]
        %v1253 = vld [vmem:[%s1250 + $0x8] sm:$0xf]
        %v1254 = vld [vmem:[%s1250 + $0xc] sm:$0xf]
        %s1255 = scalar_lea.vmem %s2, 2
        %v1256 = vld [vmem:[%s1255] sm:$0x1]
        %v1258 = vlaneseq
        %v1259 = vshrl.u32 %v1258, 7
        %v1260 = vsub.s32 0, %v1259
        %v1261 = vrot.slane %v1256, %v1260
        %v1267 = vunpack.c.l.b16 %v1251
        %v1268 = vunpack.c.l.b16 %v1252
        %v1269 = vunpack.c.l.b16 %v1253
        %v1270 = vunpack.c.l.b16 %v1254
        %v1271 = vpack.c.b16 %v1268, %v1267
        %v1272 = vpack.c.b16 %v1270, %v1269
        %1275 = vmatprep.subr.bf16.mxu0 0
        %1276 = vmatpush1.bf16.msra.mxu0 %v1271
        %1277 = vmatprep.subr.bf16.mxu0 0
        %1278 = vmatpush1.bf16.msra.mxu0 %v1272
        %1279 = vmatprep.subr.bf16.mxu0 0
        %1280 = vmatpush1.bf16.msra.mxu0 0
        %1281 = vmatprep.subr.bf16.mxu0 0
        %1282 = vmatpush1.bf16.msra.mxu0 0
        %1283 = vmatprep.subr.bf16.mxu0 0
        %1284 = vmatpush1.bf16.msra.mxu0 0
        %1285 = vmatprep.subr.bf16.mxu0 0
        %1286 = vmatpush1.bf16.msra.mxu0 0
        %1287 = vmatprep.subr.bf16.mxu0 0
        %1288 = vmatpush1.bf16.msra.mxu0 0
        %1289 = vmatprep.subr.bf16.mxu0 0
        %1290 = vmatpush1.bf16.msra.mxu0 0
        %1291 = vmatprep.subr.bf16.mxu0 0
        %1292 = vmatpush1.bf16.msra.mxu0 0
        %1293 = vmatprep.subr.bf16.mxu0 0
        %1294 = vmatpush1.bf16.msra.mxu0 0
        %1295 = vmatprep.subr.bf16.mxu0 0
        %1296 = vmatpush1.bf16.msra.mxu0 0
        %1297 = vmatprep.subr.bf16.mxu0 0
        %1298 = vmatpush1.bf16.msra.mxu0 0
        %1299 = vmatprep.subr.bf16.mxu0 0
        %1300 = vmatpush1.bf16.msra.mxu0 0
        %1301 = vmatprep.subr.bf16.mxu0 0
        %1302 = vmatpush1.bf16.msra.mxu0 0
        %1303 = vmatprep.subr.bf16.mxu0 0
        %1304 = vmatpush1.bf16.msra.mxu0 0
        %1305 = vmatprep.subr.bf16.mxu0 0
        %1306 = vmatpush1.bf16.msra.mxu0 0
        %1307 = vmatprep.mubr.bf16.mxu0 0
        %1308 = vmatmul.mubr.bf16.gmra.mrb[0].mxu0 %v572
        %v1309 = vpop.f32.mrb[0].mxu0
        %v1310 = vadd.f32 %v1261, %v1309
        %v1311 = vpop.f32.mrb[0].mxu0
        %v1312 = vpop.f32.mrb[0].mxu0
        %v1313 = vpop.f32.mrb[0].mxu0
        %1314 = vdwg.mxu0
        %s1315 = scalar_lea.vmem %s3, 32
        %v1316 = vld [vmem:[%s1315] sm:$0xf]
        %v1317 = vld [vmem:[%s1315 + $0x4] sm:$0xf]
        %v1318 = vld [vmem:[%s1315 + $0x8] sm:$0xf]
        %v1319 = vld [vmem:[%s1315 + $0xc] sm:$0xf]
        %s1320 = scalar_lea.vmem %s4, 2
        %v1321 = vld [vmem:[%s1320] sm:$0x1]
        %v1323 = vlaneseq
        %v1324 = vshrl.u32 %v1323, 7
        %v1325 = vsub.s32 0, %v1324
        %v1326 = vrot.slane %v1321, %v1325
        %v1332 = vunpack.c.l.b16 %v1316
        %v1333 = vunpack.c.l.b16 %v1317
        %v1334 = vunpack.c.l.b16 %v1318
        %v1335 = vunpack.c.l.b16 %v1319
        %v1336 = vpack.c.b16 %v1333, %v1332
        %v1337 = vpack.c.b16 %v1335, %v1334
        %1340 = vmatprep.subr.bf16.mxu0 0
        %1341 = vmatpush1.bf16.msra.mxu0 %v1336
        %1342 = vmatprep.subr.bf16.mxu0 0
        %1343 = vmatpush1.bf16.msra.mxu0 %v1337
        %1344 = vmatprep.subr.bf16.mxu0 0
        %1345 = vmatpush1.bf16.msra.mxu0 0
        %1346 = vmatprep.subr.bf16.mxu0 0
        %1347 = vmatpush1.bf16.msra.mxu0 0
        %1348 = vmatprep.subr.bf16.mxu0 0
        %1349 = vmatpush1.bf16.msra.mxu0 0
        %1350 = vmatprep.subr.bf16.mxu0 0
        %1351 = vmatpush1.bf16.msra.mxu0 0
        %1352 = vmatprep.subr.bf16.mxu0 0
        %1353 = vmatpush1.bf16.msra.mxu0 0
        %1354 = vmatprep.subr.bf16.mxu0 0
        %1355 = vmatpush1.bf16.msra.mxu0 0
        %1356 = vmatprep.subr.bf16.mxu0 0
        %1357 = vmatpush1.bf16.msra.mxu0 0
        %1358 = vmatprep.subr.bf16.mxu0 0
        %1359 = vmatpush1.bf16.msra.mxu0 0
        %1360 = vmatprep.subr.bf16.mxu0 0
        %1361 = vmatpush1.bf16.msra.mxu0 0
        %1362 = vmatprep.subr.bf16.mxu0 0
        %1363 = vmatpush1.bf16.msra.mxu0 0
        %1364 = vmatprep.subr.bf16.mxu0 0
        %1365 = vmatpush1.bf16.msra.mxu0 0
        %1366 = vmatprep.subr.bf16.mxu0 0
        %1367 = vmatpush1.bf16.msra.mxu0 0
        %1368 = vmatprep.subr.bf16.mxu0 0
        %1369 = vmatpush1.bf16.msra.mxu0 0
        %1370 = vmatprep.subr.bf16.mxu0 0
        %1371 = vmatpush1.bf16.msra.mxu0 0
        %1372 = vmatprep.mubr.bf16.mxu0 0
        %1373 = vmatmul.mubr.bf16.gmra.mrb[0].mxu0 %v572
        %v1374 = vpop.f32.mrb[0].mxu0
        %v1375 = vadd.f32 %v1326, %v1374
        %v1376 = vpop.f32.mrb[0].mxu0
        %v1377 = vpop.f32.mrb[0].mxu0
        %v1378 = vpop.f32.mrb[0].mxu0
        %1379 = vdwg.mxu0
        %s1380 = scalar_lea.vmem %s5, 32
        %v1381 = vld [vmem:[%s1380] sm:$0xf]
        %v1382 = vld [vmem:[%s1380 + $0x4] sm:$0xf]
        %v1383 = vld [vmem:[%s1380 + $0x8] sm:$0xf]
        %v1384 = vld [vmem:[%s1380 + $0xc] sm:$0xf]
        %s1385 = scalar_lea.vmem %s6, 2
        %v1386 = vld [vmem:[%s1385] sm:$0x1]
        %v1388 = vlaneseq
        %v1389 = vshrl.u32 %v1388, 7
        %v1390 = vsub.s32 0, %v1389
        %v1391 = vrot.slane %v1386, %v1390
        %v1397 = vunpack.c.l.b16 %v1381
        %v1398 = vunpack.c.l.b16 %v1382
        %v1399 = vunpack.c.l.b16 %v1383
        %v1400 = vunpack.c.l.b16 %v1384
        %v1401 = vpack.c.b16 %v1398, %v1397
        %v1402 = vpack.c.b16 %v1400, %v1399
        %1405 = vmatprep.subr.bf16.mxu0 0
        %1406 = vmatpush1.bf16.msra.mxu0 %v1401
        %1407 = vmatprep.subr.bf16.mxu0 0
        %1408 = vmatpush1.bf16.msra.mxu0 %v1402
        %1409 = vmatprep.subr.bf16.mxu0 0
        %1410 = vmatpush1.bf16.msra.mxu0 0
        %1411 = vmatprep.subr.bf16.mxu0 0
        %1412 = vmatpush1.bf16.msra.mxu0 0
        %1413 = vmatprep.subr.bf16.mxu0 0
        %1414 = vmatpush1.bf16.msra.mxu0 0
        %1415 = vmatprep.subr.bf16.mxu0 0
        %1416 = vmatpush1.bf16.msra.mxu0 0
        %1417 = vmatprep.subr.bf16.mxu0 0
        %1418 = vmatpush1.bf16.msra.mxu0 0
        %1419 = vmatprep.subr.bf16.mxu0 0
        %1420 = vmatpush1.bf16.msra.mxu0 0
        %1421 = vmatprep.subr.bf16.mxu0 0
        %1422 = vmatpush1.bf16.msra.mxu0 0
        %1423 = vmatprep.subr.bf16.mxu0 0
        %1424 = vmatpush1.bf16.msra.mxu0 0
        %1425 = vmatprep.subr.bf16.mxu0 0
        %1426 = vmatpush1.bf16.msra.mxu0 0
        %1427 = vmatprep.subr.bf16.mxu0 0
        %1428 = vmatpush1.bf16.msra.mxu0 0
        %1429 = vmatprep.subr.bf16.mxu0 0
        %1430 = vmatpush1.bf16.msra.mxu0 0
        %1431 = vmatprep.subr.bf16.mxu0 0
        %1432 = vmatpush1.bf16.msra.mxu0 0
        %1433 = vmatprep.subr.bf16.mxu0 0
        %1434 = vmatpush1.bf16.msra.mxu0 0
        %1435 = vmatprep.subr.bf16.mxu0 0
        %1436 = vmatpush1.bf16.msra.mxu0 0
        %1437 = vmatprep.mubr.bf16.mxu0 0
        %1438 = vmatmul.mubr.bf16.gmra.mrb[0].mxu0 %v572
        %v1439 = vpop.f32.mrb[0].mxu0
        %v1440 = vadd.f32 %v1391, %v1439
        %v1441 = vpop.f32.mrb[0].mxu0
        %v1442 = vpop.f32.mrb[0].mxu0
        %v1443 = vpop.f32.mrb[0].mxu0
        %1444 = vdwg.mxu0
        %v1445 = vpack.c.bf16 %v1310, %v1310
        %v1446 = vpack.c.bf16 %v1375, %v1375
        %v1448 = vsel %vm742, %v1445, 0
        %v1451 = vsel %vm742, %v1446, 0
        %1453 = vmatprep.subr.bf16.mxu0 0
        %1454 = vmatpush1.bf16.xpose.msra.mxu0 %v1451
        %1455 = vmatprep.subr.bf16.mxu0 0
        %1456 = vmatpush1.bf16.xpose.msra.mxu0 0
        %1457 = vmatprep.subr.bf16.mxu0 0
        %1458 = vmatpush1.bf16.xpose.msra.mxu0 0
        %1459 = vmatprep.subr.bf16.mxu0 0
        %1460 = vmatpush1.bf16.xpose.msra.mxu0 0
        %1461 = vmatprep.subr.bf16.mxu0 0
        %1462 = vmatpush1.bf16.xpose.msra.mxu0 0
        %1463 = vmatprep.subr.bf16.mxu0 0
        %1464 = vmatpush1.bf16.xpose.msra.mxu0 0
        %1465 = vmatprep.subr.bf16.mxu0 0
        %1466 = vmatpush1.bf16.xpose.msra.mxu0 0
        %1467 = vmatprep.subr.bf16.mxu0 0
        %1468 = vmatpush1.bf16.xpose.msra.mxu0 0
        %1469 = vmatprep.subr.bf16.mxu0 0
        %1470 = vmatpush1.bf16.xpose.msra.mxu0 0
        %1471 = vmatprep.subr.bf16.mxu0 0
        %1472 = vmatpush1.bf16.xpose.msra.mxu0 0
        %1473 = vmatprep.subr.bf16.mxu0 0
        %1474 = vmatpush1.bf16.xpose.msra.mxu0 0
        %1475 = vmatprep.subr.bf16.mxu0 0
        %1476 = vmatpush1.bf16.xpose.msra.mxu0 0
        %1477 = vmatprep.subr.bf16.mxu0 0
        %1478 = vmatpush1.bf16.xpose.msra.mxu0 0
        %1479 = vmatprep.subr.bf16.mxu0 0
        %1480 = vmatpush1.bf16.xpose.msra.mxu0 0
        %1481 = vmatprep.subr.bf16.mxu0 0
        %1482 = vmatpush1.bf16.xpose.msra.mxu0 0
        %1483 = vmatprep.subr.bf16.mxu0 0
        %1484 = vmatpush1.bf16.xpose.msra.mxu0 0
        %1485 = vmatprep.mubr.bf16.mxu0 0
        %1486 = vmatmul.mubr.bf16.gmra.mrb[0].mxu0 %v1448
        %v1487 = vpop.f32.mrb[0].mxu0
        %v1488 = vadd.f32 0.0, %v1487
        %v1489 = vpop.f32.mrb[0].mxu0
        %v1490 = vpop.f32.mrb[0].mxu0
        %v1491 = vpop.f32.mrb[0].mxu0
        %1492 = vdwg.mxu0
        %v1493 = vmul.f32 %v1488, 0.35355338
        %v1494 = vsel %vm742, %v1493, -inf
        %1495 = vmax.xlane.f32.xlu0 %v1494
        %v1496 = vpop.xlane.xlu0 %1495
        %v1497 = vsub.f32 %v1493, %v1496
        %v1498 = vmul.f32 %v1497, 1.442695
        %v1499 = vpow.pop %v1498
        %v1500 = vsel %vm742, %v1499, 0.0
        %1501 = vadd.xlane.f32.xlu0 %v1500
        %v1502 = vpop.xlane.xlu0 %1501
        %v1503 = vrcp.pop %v1502
        %v1504 = vmul.f32 %v1499, %v1503
        %v1505 = vpack.c.bf16 %v1504, %v1504
        %v1506 = vpack.c.bf16 %v1440, %v1440
        %v1508 = vsel %vm742, %v1505, 0
        %v1511 = vsel %vm806, %v1506, 0
        %1513 = vmatprep.subr.bf16.mxu0 0
        %1514 = vmatpush1.bf16.msra.mxu0 %v1511
        %1515 = vmatprep.subr.bf16.mxu0 0
        %1516 = vmatpush1.bf16.msra.mxu0 0
        %1517 = vmatprep.subr.bf16.mxu0 0
        %1518 = vmatpush1.bf16.msra.mxu0 0
        %1519 = vmatprep.subr.bf16.mxu0 0
        %1520 = vmatpush1.bf16.msra.mxu0 0
        %1521 = vmatprep.subr.bf16.mxu0 0
        %1522 = vmatpush1.bf16.msra.mxu0 0
        %1523 = vmatprep.subr.bf16.mxu0 0
        %1524 = vmatpush1.bf16.msra.mxu0 0
        %1525 = vmatprep.subr.bf16.mxu0 0
        %1526 = vmatpush1.bf16.msra.mxu0 0
        %1527 = vmatprep.subr.bf16.mxu0 0
        %1528 = vmatpush1.bf16.msra.mxu0 0
        %1529 = vmatprep.subr.bf16.mxu0 0
        %1530 = vmatpush1.bf16.msra.mxu0 0
        %1531 = vmatprep.subr.bf16.mxu0 0
        %1532 = vmatpush1.bf16.msra.mxu0 0
        %1533 = vmatprep.subr.bf16.mxu0 0
        %1534 = vmatpush1.bf16.msra.mxu0 0
        %1535 = vmatprep.subr.bf16.mxu0 0
        %1536 = vmatpush1.bf16.msra.mxu0 0
        %1537 = vmatprep.subr.bf16.mxu0 0
        %1538 = vmatpush1.bf16.msra.mxu0 0
        %1539 = vmatprep.subr.bf16.mxu0 0
        %1540 = vmatpush1.bf16.msra.mxu0 0
        %1541 = vmatprep.subr.bf16.mxu0 0
        %1542 = vmatpush1.bf16.msra.mxu0 0
        %1543 = vmatprep.subr.bf16.mxu0 0
        %1544 = vmatpush1.bf16.msra.mxu0 0
        %1545 = vmatprep.mubr.bf16.mxu0 0
        %1546 = vmatmul.mubr.bf16.gmra.mrb[0].mxu0 %v1508
        %v1547 = vpop.f32.mrb[0].mxu0
        %v1548 = vadd.f32 0.0, %v1547
        %v1549 = vpop.f32.mrb[0].mxu0
        %v1550 = vpop.f32.mrb[0].mxu0
        %v1551 = vpop.f32.mrb[0].mxu0
        %1552 = vdwg.mxu0
        %v1553 = vpack.c.bf16 %v1548, %v1548
        %s1554 = scalar_lea.vmem %s7, 8
        %v1555 = vld [vmem:[%s1554] sm:$0xf]
        %v1557 = vsel %vm742, %v1553, 0
        %v1560 = vsel %vm806, %v1555, 0
        %1562 = vmatprep.subr.bf16.mxu0 0
        %1563 = vmatpush1.bf16.msra.mxu0 %v1560
        %1564 = vmatprep.subr.bf16.mxu0 0
        %1565 = vmatpush1.bf16.msra.mxu0 0
        %1566 = vmatprep.subr.bf16.mxu0 0
        %1567 = vmatpush1.bf16.msra.mxu0 0
        %1568 = vmatprep.subr.bf16.mxu0 0
        %1569 = vmatpush1.bf16.msra.mxu0 0
        %1570 = vmatprep.subr.bf16.mxu0 0
        %1571 = vmatpush1.bf16.msra.mxu0 0
        %1572 = vmatprep.subr.bf16.mxu0 0
        %1573 = vmatpush1.bf16.msra.mxu0 0
        %1574 = vmatprep.subr.bf16.mxu0 0
        %1575 = vmatpush1.bf16.msra.mxu0 0
        %1576 = vmatprep.subr.bf16.mxu0 0
        %1577 = vmatpush1.bf16.msra.mxu0 0
        %1578 = vmatprep.subr.bf16.mxu0 0
        %1579 = vmatpush1.bf16.msra.mxu0 0
        %1580 = vmatprep.subr.bf16.mxu0 0
        %1581 = vmatpush1.bf16.msra.mxu0 0
        %1582 = vmatprep.subr.bf16.mxu0 0
        %1583 = vmatpush1.bf16.msra.mxu0 0
        %1584 = vmatprep.subr.bf16.mxu0 0
        %1585 = vmatpush1.bf16.msra.mxu0 0
        %1586 = vmatprep.subr.bf16.mxu0 0
        %1587 = vmatpush1.bf16.msra.mxu0 0
        %1588 = vmatprep.subr.bf16.mxu0 0
        %1589 = vmatpush1.bf16.msra.mxu0 0
        %1590 = vmatprep.subr.bf16.mxu0 0
        %1591 = vmatpush1.bf16.msra.mxu0 0
        %1592 = vmatprep.subr.bf16.mxu0 0
        %1593 = vmatpush1.bf16.msra.mxu0 0
        %1594 = vmatprep.mubr.bf16.mxu0 0
        %1595 = vmatmul.mubr.bf16.gmra.mrb[0].mxu0 %v1557
        %v1596 = vpop.f32.mrb[0].mxu0
        %v1597 = vadd.f32 0.0, %v1596
        %v1598 = vpop.f32.mrb[0].mxu0
        %v1599 = vpop.f32.mrb[0].mxu0
        %v1600 = vpop.f32.mrb[0].mxu0
        %1601 = vdwg.mxu0
        %v1602 = vadd.f32 %v1245, %v1597
        %s1603 = scalar_lea.vmem %s1, 48
        %v1604 = vld [vmem:[%s1603] sm:$0xf]
        %v1605 = vld [vmem:[%s1603 + $0x4] sm:$0xf]
        %v1606 = vld [vmem:[%s1603 + $0x8] sm:$0xf]
        %v1607 = vld [vmem:[%s1603 + $0xc] sm:$0xf]
        %s1608 = scalar_lea.vmem %s2, 3
        %v1609 = vld [vmem:[%s1608] sm:$0x1]
        %v1611 = vlaneseq
        %v1612 = vshrl.u32 %v1611, 7
        %v1613 = vsub.s32 0, %v1612
        %v1614 = vrot.slane %v1609, %v1613
        %v1620 = vunpack.c.l.b16 %v1604
        %v1621 = vunpack.c.l.b16 %v1605
        %v1622 = vunpack.c.l.b16 %v1606
        %v1623 = vunpack.c.l.b16 %v1607
        %v1624 = vpack.c.b16 %v1621, %v1620
        %v1625 = vpack.c.b16 %v1623, %v1622
        %1628 = vmatprep.subr.bf16.mxu0 0
        %1629 = vmatpush1.bf16.msra.mxu0 %v1624
        %1630 = vmatprep.subr.bf16.mxu0 0
        %1631 = vmatpush1.bf16.msra.mxu0 %v1625
        %1632 = vmatprep.subr.bf16.mxu0 0
        %1633 = vmatpush1.bf16.msra.mxu0 0
        %1634 = vmatprep.subr.bf16.mxu0 0
        %1635 = vmatpush1.bf16.msra.mxu0 0
        %1636 = vmatprep.subr.bf16.mxu0 0
        %1637 = vmatpush1.bf16.msra.mxu0 0
        %1638 = vmatprep.subr.bf16.mxu0 0
        %1639 = vmatpush1.bf16.msra.mxu0 0
        %1640 = vmatprep.subr.bf16.mxu0 0
        %1641 = vmatpush1.bf16.msra.mxu0 0
        %1642 = vmatprep.subr.bf16.mxu0 0
        %1643 = vmatpush1.bf16.msra.mxu0 0
        %1644 = vmatprep.subr.bf16.mxu0 0
        %1645 = vmatpush1.bf16.msra.mxu0 0
        %1646 = vmatprep.subr.bf16.mxu0 0
        %1647 = vmatpush1.bf16.msra.mxu0 0
        %1648 = vmatprep.subr.bf16.mxu0 0
        %1649 = vmatpush1.bf16.msra.mxu0 0
        %1650 = vmatprep.subr.bf16.mxu0 0
        %1651 = vmatpush1.bf16.msra.mxu0 0
        %1652 = vmatprep.subr.bf16.mxu0 0
        %1653 = vmatpush1.bf16.msra.mxu0 0
        %1654 = vmatprep.subr.bf16.mxu0 0
        %1655 = vmatpush1.bf16.msra.mxu0 0
        %1656 = vmatprep.subr.bf16.mxu0 0
        %1657 = vmatpush1.bf16.msra.mxu0 0
        %1658 = vmatprep.subr.bf16.mxu0 0
        %1659 = vmatpush1.bf16.msra.mxu0 0
        %1660 = vmatprep.mubr.bf16.mxu0 0
        %1661 = vmatmul.mubr.bf16.gmra.mrb[0].mxu0 %v572
        %v1662 = vpop.f32.mrb[0].mxu0
        %v1663 = vadd.f32 %v1614, %v1662
        %v1664 = vpop.f32.mrb[0].mxu0
        %v1665 = vpop.f32.mrb[0].mxu0
        %v1666 = vpop.f32.mrb[0].mxu0
        %1667 = vdwg.mxu0
        %s1668 = scalar_lea.vmem %s3, 48
        %v1669 = vld [vmem:[%s1668] sm:$0xf]
        %v1670 = vld [vmem:[%s1668 + $0x4] sm:$0xf]
        %v1671 = vld [vmem:[%s1668 + $0x8] sm:$0xf]
        %v1672 = vld [vmem:[%s1668 + $0xc] sm:$0xf]
        %s1673 = scalar_lea.vmem %s4, 3
        %v1674 = vld [vmem:[%s1673] sm:$0x1]
        %v1676 = vlaneseq
        %v1677 = vshrl.u32 %v1676, 7
        %v1678 = vsub.s32 0, %v1677
        %v1679 = vrot.slane %v1674, %v1678
        %v1685 = vunpack.c.l.b16 %v1669
        %v1686 = vunpack.c.l.b16 %v1670
        %v1687 = vunpack.c.l.b16 %v1671
        %v1688 = vunpack.c.l.b16 %v1672
        %v1689 = vpack.c.b16 %v1686, %v1685
        %v1690 = vpack.c.b16 %v1688, %v1687
        %1693 = vmatprep.subr.bf16.mxu0 0
        %1694 = vmatpush1.bf16.msra.mxu0 %v1689
        %1695 = vmatprep.subr.bf16.mxu0 0
        %1696 = vmatpush1.bf16.msra.mxu0 %v1690
        %1697 = vmatprep.subr.bf16.mxu0 0
        %1698 = vmatpush1.bf16.msra.mxu0 0
        %1699 = vmatprep.subr.bf16.mxu0 0
        %1700 = vmatpush1.bf16.msra.mxu0 0
        %1701 = vmatprep.subr.bf16.mxu0 0
        %1702 = vmatpush1.bf16.msra.mxu0 0
        %1703 = vmatprep.subr.bf16.mxu0 0
        %1704 = vmatpush1.bf16.msra.mxu0 0
        %1705 = vmatprep.subr.bf16.mxu0 0
        %1706 = vmatpush1.bf16.msra.mxu0 0
        %1707 = vmatprep.subr.bf16.mxu0 0
        %1708 = vmatpush1.bf16.msra.mxu0 0
        %1709 = vmatprep.subr.bf16.mxu0 0
        %1710 = vmatpush1.bf16.msra.mxu0 0
        %1711 = vmatprep.subr.bf16.mxu0 0
        %1712 = vmatpush1.bf16.msra.mxu0 0
        %1713 = vmatprep.subr.bf16.mxu0 0
        %1714 = vmatpush1.bf16.msra.mxu0 0
        %1715 = vmatprep.subr.bf16.mxu0 0
        %1716 = vmatpush1.bf16.msra.mxu0 0
        %1717 = vmatprep.subr.bf16.mxu0 0
        %1718 = vmatpush1.bf16.msra.mxu0 0
        %1719 = vmatprep.subr.bf16.mxu0 0
        %1720 = vmatpush1.bf16.msra.mxu0 0
        %1721 = vmatprep.subr.bf16.mxu0 0
        %1722 = vmatpush1.bf16.msra.mxu0 0
        %1723 = vmatprep.subr.bf16.mxu0 0
        %1724 = vmatpush1.bf16.msra.mxu0 0
        %1725 = vmatprep.mubr.bf16.mxu0 0
        %1726 = vmatmul.mubr.bf16.gmra.mrb[0].mxu0 %v572
        %v1727 = vpop.f32.mrb[0].mxu0
        %v1728 = vadd.f32 %v1679, %v1727
        %v1729 = vpop.f32.mrb[0].mxu0
        %v1730 = vpop.f32.mrb[0].mxu0
        %v1731 = vpop.f32.mrb[0].mxu0
        %1732 = vdwg.mxu0
        %s1733 = scalar_lea.vmem %s5, 48
        %v1734 = vld [vmem:[%s1733] sm:$0xf]
        %v1735 = vld [vmem:[%s1733 + $0x4] sm:$0xf]
        %v1736 = vld [vmem:[%s1733 + $0x8] sm:$0xf]
        %v1737 = vld [vmem:[%s1733 + $0xc] sm:$0xf]
        %s1738 = scalar_lea.vmem %s6, 3
        %v1739 = vld [vmem:[%s1738] sm:$0x1]
        %v1741 = vlaneseq
        %v1742 = vshrl.u32 %v1741, 7
        %v1743 = vsub.s32 0, %v1742
        %v1744 = vrot.slane %v1739, %v1743
        %v1750 = vunpack.c.l.b16 %v1734
        %v1751 = vunpack.c.l.b16 %v1735
        %v1752 = vunpack.c.l.b16 %v1736
        %v1753 = vunpack.c.l.b16 %v1737
        %v1754 = vpack.c.b16 %v1751, %v1750
        %v1755 = vpack.c.b16 %v1753, %v1752
        %1758 = vmatprep.subr.bf16.mxu0 0
        %1759 = vmatpush1.bf16.msra.mxu0 %v1754
        %1760 = vmatprep.subr.bf16.mxu0 0
        %1761 = vmatpush1.bf16.msra.mxu0 %v1755
        %1762 = vmatprep.subr.bf16.mxu0 0
        %1763 = vmatpush1.bf16.msra.mxu0 0
        %1764 = vmatprep.subr.bf16.mxu0 0
        %1765 = vmatpush1.bf16.msra.mxu0 0
        %1766 = vmatprep.subr.bf16.mxu0 0
        %1767 = vmatpush1.bf16.msra.mxu0 0
        %1768 = vmatprep.subr.bf16.mxu0 0
        %1769 = vmatpush1.bf16.msra.mxu0 0
        %1770 = vmatprep.subr.bf16.mxu0 0
        %1771 = vmatpush1.bf16.msra.mxu0 0
        %1772 = vmatprep.subr.bf16.mxu0 0
        %1773 = vmatpush1.bf16.msra.mxu0 0
        %1774 = vmatprep.subr.bf16.mxu0 0
        %1775 = vmatpush1.bf16.msra.mxu0 0
        %1776 = vmatprep.subr.bf16.mxu0 0
        %1777 = vmatpush1.bf16.msra.mxu0 0
        %1778 = vmatprep.subr.bf16.mxu0 0
        %1779 = vmatpush1.bf16.msra.mxu0 0
        %1780 = vmatprep.subr.bf16.mxu0 0
        %1781 = vmatpush1.bf16.msra.mxu0 0
        %1782 = vmatprep.subr.bf16.mxu0 0
        %1783 = vmatpush1.bf16.msra.mxu0 0
        %1784 = vmatprep.subr.bf16.mxu0 0
        %1785 = vmatpush1.bf16.msra.mxu0 0
        %1786 = vmatprep.subr.bf16.mxu0 0
        %1787 = vmatpush1.bf16.msra.mxu0 0
        %1788 = vmatprep.subr.bf16.mxu0 0
        %1789 = vmatpush1.bf16.msra.mxu0 0
        %1790 = vmatprep.mubr.bf16.mxu0 0
        %1791 = vmatmul.mubr.bf16.gmra.mrb[0].mxu0 %v572
        %v1792 = vpop.f32.mrb[0].mxu0
        %v1793 = vadd.f32 %v1744, %v1792
        %v1794 = vpop.f32.mrb[0].mxu0
        %v1795 = vpop.f32.mrb[0].mxu0
        %v1796 = vpop.f32.mrb[0].mxu0
        %1797 = vdwg.mxu0
        %v1798 = vpack.c.bf16 %v1663, %v1663
        %v1799 = vpack.c.bf16 %v1728, %v1728
        %v1801 = vsel %vm742, %v1798, 0
        %v1804 = vsel %vm742, %v1799, 0
        %1806 = vmatprep.subr.bf16.mxu0 0
        %1807 = vmatpush1.bf16.xpose.msra.mxu0 %v1804
        %1808 = vmatprep.subr.bf16.mxu0 0
        %1809 = vmatpush1.bf16.xpose.msra.mxu0 0
        %1810 = vmatprep.subr.bf16.mxu0 0
        %1811 = vmatpush1.bf16.xpose.msra.mxu0 0
        %1812 = vmatprep.subr.bf16.mxu0 0
        %1813 = vmatpush1.bf16.xpose.msra.mxu0 0
        %1814 = vmatprep.subr.bf16.mxu0 0
        %1815 = vmatpush1.bf16.xpose.msra.mxu0 0
        %1816 = vmatprep.subr.bf16.mxu0 0
        %1817 = vmatpush1.bf16.xpose.msra.mxu0 0
        %1818 = vmatprep.subr.bf16.mxu0 0
        %1819 = vmatpush1.bf16.xpose.msra.mxu0 0
        %1820 = vmatprep.subr.bf16.mxu0 0
        %1821 = vmatpush1.bf16.xpose.msra.mxu0 0
        %1822 = vmatprep.subr.bf16.mxu0 0
        %1823 = vmatpush1.bf16.xpose.msra.mxu0 0
        %1824 = vmatprep.subr.bf16.mxu0 0
        %1825 = vmatpush1.bf16.xpose.msra.mxu0 0
        %1826 = vmatprep.subr.bf16.mxu0 0
        %1827 = vmatpush1.bf16.xpose.msra.mxu0 0
        %1828 = vmatprep.subr.bf16.mxu0 0
        %1829 = vmatpush1.bf16.xpose.msra.mxu0 0
        %1830 = vmatprep.subr.bf16.mxu0 0
        %1831 = vmatpush1.bf16.xpose.msra.mxu0 0
        %1832 = vmatprep.subr.bf16.mxu0 0
        %1833 = vmatpush1.bf16.xpose.msra.mxu0 0
        %1834 = vmatprep.subr.bf16.mxu0 0
        %1835 = vmatpush1.bf16.xpose.msra.mxu0 0
        %1836 = vmatprep.subr.bf16.mxu0 0
        %1837 = vmatpush1.bf16.xpose.msra.mxu0 0
        %1838 = vmatprep.mubr.bf16.mxu0 0
        %1839 = vmatmul.mubr.bf16.gmra.mrb[0].mxu0 %v1801
        %v1840 = vpop.f32.mrb[0].mxu0
        %v1841 = vadd.f32 0.0, %v1840
        %v1842 = vpop.f32.mrb[0].mxu0
        %v1843 = vpop.f32.mrb[0].mxu0
        %v1844 = vpop.f32.mrb[0].mxu0
        %1845 = vdwg.mxu0
        %v1846 = vmul.f32 %v1841, 0.35355338
        %v1847 = vsel %vm742, %v1846, -inf
        %1848 = vmax.xlane.f32.xlu0 %v1847
        %v1849 = vpop.xlane.xlu0 %1848
        %v1850 = vsub.f32 %v1846, %v1849
        %v1851 = vmul.f32 %v1850, 1.442695
        %v1852 = vpow.pop %v1851
        %v1853 = vsel %vm742, %v1852, 0.0
        %1854 = vadd.xlane.f32.xlu0 %v1853
        %v1855 = vpop.xlane.xlu0 %1854
        %v1856 = vrcp.pop %v1855
        %v1857 = vmul.f32 %v1852, %v1856
        %v1858 = vpack.c.bf16 %v1857, %v1857
        %v1859 = vpack.c.bf16 %v1793, %v1793
        %v1861 = vsel %vm742, %v1858, 0
        %v1864 = vsel %vm806, %v1859, 0
        %1866 = vmatprep.subr.bf16.mxu0 0
        %1867 = vmatpush1.bf16.msra.mxu0 %v1864
        %1868 = vmatprep.subr.bf16.mxu0 0
        %1869 = vmatpush1.bf16.msra.mxu0 0
        %1870 = vmatprep.subr.bf16.mxu0 0
        %1871 = vmatpush1.bf16.msra.mxu0 0
        %1872 = vmatprep.subr.bf16.mxu0 0
        %1873 = vmatpush1.bf16.msra.mxu0 0
        %1874 = vmatprep.subr.bf16.mxu0 0
        %1875 = vmatpush1.bf16.msra.mxu0 0
        %1876 = vmatprep.subr.bf16.mxu0 0
        %1877 = vmatpush1.bf16.msra.mxu0 0
        %1878 = vmatprep.subr.bf16.mxu0 0
        %1879 = vmatpush1.bf16.msra.mxu0 0
        %1880 = vmatprep.subr.bf16.mxu0 0
        %1881 = vmatpush1.bf16.msra.mxu0 0
        %1882 = vmatprep.subr.bf16.mxu0 0
        %1883 = vmatpush1.bf16.msra.mxu0 0
        %1884 = vmatprep.subr.bf16.mxu0 0
        %1885 = vmatpush1.bf16.msra.mxu0 0
        %1886 = vmatprep.subr.bf16.mxu0 0
        %1887 = vmatpush1.bf16.msra.mxu0 0
        %1888 = vmatprep.subr.bf16.mxu0 0
        %1889 = vmatpush1.bf16.msra.mxu0 0
        %1890 = vmatprep.subr.bf16.mxu0 0
        %1891 = vmatpush1.bf16.msra.mxu0 0
        %1892 = vmatprep.subr.bf16.mxu0 0
        %1893 = vmatpush1.bf16.msra.mxu0 0
        %1894 = vmatprep.subr.bf16.mxu0 0
        %1895 = vmatpush1.bf16.msra.mxu0 0
        %1896 = vmatprep.subr.bf16.mxu0 0
        %1897 = vmatpush1.bf16.msra.mxu0 0
        %1898 = vmatprep.mubr.bf16.mxu0 0
        %1899 = vmatmul.mubr.bf16.gmra.mrb[0].mxu0 %v1861
        %v1900 = vpop.f32.mrb[0].mxu0
        %v1901 = vadd.f32 0.0, %v1900
        %v1902 = vpop.f32.mrb[0].mxu0
        %v1903 = vpop.f32.mrb[0].mxu0
        %v1904 = vpop.f32.mrb[0].mxu0
        %1905 = vdwg.mxu0
        %v1906 = vpack.c.bf16 %v1901, %v1901
        %s1907 = scalar_lea.vmem %s7, 12
        %v1908 = vld [vmem:[%s1907] sm:$0xf]
        %v1910 = vsel %vm742, %v1906, 0
        %v1913 = vsel %vm806, %v1908, 0
        %1915 = vmatprep.subr.bf16.mxu0 0
        %1916 = vmatpush1.bf16.msra.mxu0 %v1913
        %1917 = vmatprep.subr.bf16.mxu0 0
        %1918 = vmatpush1.bf16.msra.mxu0 0
        %1919 = vmatprep.subr.bf16.mxu0 0
        %1920 = vmatpush1.bf16.msra.mxu0 0
        %1921 = vmatprep.subr.bf16.mxu0 0
        %1922 = vmatpush1.bf16.msra.mxu0 0
        %1923 = vmatprep.subr.bf16.mxu0 0
        %1924 = vmatpush1.bf16.msra.mxu0 0
        %1925 = vmatprep.subr.bf16.mxu0 0
        %1926 = vmatpush1.bf16.msra.mxu0 0
        %1927 = vmatprep.subr.bf16.mxu0 0
        %1928 = vmatpush1.bf16.msra.mxu0 0
        %1929 = vmatprep.subr.bf16.mxu0 0
        %1930 = vmatpush1.bf16.msra.mxu0 0
        %1931 = vmatprep.subr.bf16.mxu0 0
        %1932 = vmatpush1.bf16.msra.mxu0 0
        %1933 = vmatprep.subr.bf16.mxu0 0
        %1934 = vmatpush1.bf16.msra.mxu0 0
        %1935 = vmatprep.subr.bf16.mxu0 0
        %1936 = vmatpush1.bf16.msra.mxu0 0
        %1937 = vmatprep.subr.bf16.mxu0 0
        %1938 = vmatpush1.bf16.msra.mxu0 0
        %1939 = vmatprep.subr.bf16.mxu0 0
        %1940 = vmatpush1.bf16.msra.mxu0 0
        %1941 = vmatprep.subr.bf16.mxu0 0
        %1942 = vmatpush1.bf16.msra.mxu0 0
        %1943 = vmatprep.subr.bf16.mxu0 0
        %1944 = vmatpush1.bf16.msra.mxu0 0
        %1945 = vmatprep.subr.bf16.mxu0 0
        %1946 = vmatpush1.bf16.msra.mxu0 0
        %1947 = vmatprep.mubr.bf16.mxu0 0
        %1948 = vmatmul.mubr.bf16.gmra.mrb[0].mxu0 %v1910
        %v1949 = vpop.f32.mrb[0].mxu0
        %v1950 = vadd.f32 0.0, %v1949
        %v1951 = vpop.f32.mrb[0].mxu0
        %v1952 = vpop.f32.mrb[0].mxu0
        %v1953 = vpop.f32.mrb[0].mxu0
        %1954 = vdwg.mxu0
        %v1955 = vadd.f32 %v1602, %v1950
        %v1956 = vld [vmem:[%s8] sm:$0x1]
        %v1958 = vlaneseq
        %v1959 = vshrl.u32 %v1958, 7
        %v1960 = vsub.s32 0, %v1959
        %v1961 = vrot.slane %v1956, %v1960
        %v1963 = vadd.f32 %v1955, %v1961
        %v1964 = vadd.f32 %v545, %v1963
        %v1965 = vld [vmem:[%s9] sm:$0x1]
        %v1966 = vld [vmem:[%s10] sm:$0x1]
        %v1967 = vsel %vm570, %v1964, 0.0
        %1968 = vadd.xlane.f32.xlu0 %v1967
        %v1969 = vpop.xlane.xlu0 %1968
        %v1970 = vrcp.pop 32.0
        %v1971 = vmul.f32 %v1969, %v1970
        %v1972 = vsub.f32 %v1964, %v1971
        %v1973 = vmul.f32 %v1972, %v1972
        %v1974 = vsel %vm570, %v1973, 0.0
        %1975 = vadd.xlane.f32.xlu0 %v1974
        %v1976 = vpop.xlane.xlu0 %1975
        %v1977 = vmul.f32 %v1976, %v1970
        %v1978 = vadd.f32 %v1977, 1e-05
        %v1979 = vrsqrt.pop %v1978
        %v1980 = vmul.f32 %v1972, %v1979
        %v1982 = vlaneseq
        %v1983 = vshrl.u32 %v1982, 7
        %v1984 = vsub.s32 0, %v1983
        %v1985 = vrot.slane %v1965, %v1984
        %v1987 = vmul.f32 %v1980, %v1985
        %v1989 = vlaneseq
        %v1990 = vshrl.u32 %v1989, 7
        %v1991 = vsub.s32 0, %v1990
        %v1992 = vrot.slane %v1966, %v1991
        %v1994 = vadd.f32 %v1987, %v1992
        %v1995 = vpack.c.bf16 %v1994, %v1994
        %v1996 = vld [vmem:[%s11] sm:$0xf]
        %v1997 = vld [vmem:[%s11 + $0x4] sm:$0xf]
        %v1998 = vld [vmem:[%s11 + $0x8] sm:$0xf]
        %v1999 = vld [vmem:[%s11 + $0xc] sm:$0xf]
        %v2000 = vld [vmem:[%s12] sm:$0x1]
        %v2002 = vlaneseq
        %v2003 = vshrl.u32 %v2002, 7
        %v2004 = vsub.s32 0, %v2003
        %v2005 = vrot.slane %v2000, %v2004
        %v2011 = vunpack.c.l.b16 %v1996
        %v2012 = vunpack.c.l.b16 %v1997
        %v2013 = vunpack.c.l.b16 %v1998
        %v2014 = vunpack.c.l.b16 %v1999
        %v2015 = vpack.c.b16 %v2012, %v2011
        %v2016 = vpack.c.b16 %v2014, %v2013
        %v2020 = vsel %vm570, %v1995, 0
        %2022 = vmatprep.subr.bf16.mxu0 0
        %2023 = vmatpush1.bf16.msra.mxu0 %v2015
        %2024 = vmatprep.subr.bf16.mxu0 0
        %2025 = vmatpush1.bf16.msra.mxu0 %v2016
        %2026 = vmatprep.subr.bf16.mxu0 0
        %2027 = vmatpush1.bf16.msra.mxu0 0
        %2028 = vmatprep.subr.bf16.mxu0 0
        %2029 = vmatpush1.bf16.msra.mxu0 0
        %2030 = vmatprep.subr.bf16.mxu0 0
        %2031 = vmatpush1.bf16.msra.mxu0 0
        %2032 = vmatprep.subr.bf16.mxu0 0
        %2033 = vmatpush1.bf16.msra.mxu0 0
        %2034 = vmatprep.subr.bf16.mxu0 0
        %2035 = vmatpush1.bf16.msra.mxu0 0
        %2036 = vmatprep.subr.bf16.mxu0 0
        %2037 = vmatpush1.bf16.msra.mxu0 0
        %2038 = vmatprep.subr.bf16.mxu0 0
        %2039 = vmatpush1.bf16.msra.mxu0 0
        %2040 = vmatprep.subr.bf16.mxu0 0
        %2041 = vmatpush1.bf16.msra.mxu0 0
        %2042 = vmatprep.subr.bf16.mxu0 0
        %2043 = vmatpush1.bf16.msra.mxu0 0
        %2044 = vmatprep.subr.bf16.mxu0 0
        %2045 = vmatpush1.bf16.msra.mxu0 0
        %2046 = vmatprep.subr.bf16.mxu0 0
        %2047 = vmatpush1.bf16.msra.mxu0 0
        %2048 = vmatprep.subr.bf16.mxu0 0
        %2049 = vmatpush1.bf16.msra.mxu0 0
        %2050 = vmatprep.subr.bf16.mxu0 0
        %2051 = vmatpush1.bf16.msra.mxu0 0
        %2052 = vmatprep.subr.bf16.mxu0 0
        %2053 = vmatpush1.bf16.msra.mxu0 0
        %2054 = vmatprep.mubr.bf16.mxu0 0
        %2055 = vmatmul.mubr.bf16.gmra.mrb[0].mxu0 %v2020
        %v2056 = vpop.f32.mrb[0].mxu0
        %v2057 = vadd.f32 %v2005, %v2056
        %v2058 = vpop.f32.mrb[0].mxu0
        %v2059 = vpop.f32.mrb[0].mxu0
        %v2060 = vpop.f32.mrb[0].mxu0
        %2061 = vdwg.mxu0
        %v2062 = vmax.f32 %v2057, 0.0
        %v2063 = vpack.c.bf16 %v2062, %v2062
        %v2064 = vld [vmem:[%s13] sm:$0xf]
        %v2065 = vld [vmem:[%s13 + $0x4] sm:$0xf]
        %v2066 = vld [vmem:[%s13 + $0x8] sm:$0xf]
        %v2067 = vld [vmem:[%s13 + $0xc] sm:$0xf]
        %v2068 = vld [vmem:[%s13 + $0x10] sm:$0xf]
        %v2069 = vld [vmem:[%s13 + $0x14] sm:$0xf]
        %v2070 = vld [vmem:[%s13 + $0x18] sm:$0xf]
        %v2071 = vld [vmem:[%s13 + $0x1c] sm:$0xf]
        %v2072 = vld [vmem:[%s14] sm:$0x1]
        %v2074 = vlaneseq
        %v2075 = vshrl.u32 %v2074, 7
        %v2076 = vsub.s32 0, %v2075
        %v2077 = vrot.slane %v2072, %v2076
        %v2087 = vunpack.c.l.b16 %v2064
        %v2088 = vunpack.c.l.b16 %v2065
        %v2089 = vunpack.c.l.b16 %v2066
        %v2090 = vunpack.c.l.b16 %v2067
        %v2091 = vunpack.c.l.b16 %v2068
        %v2092 = vunpack.c.l.b16 %v2069
        %v2093 = vunpack.c.l.b16 %v2070
        %v2094 = vunpack.c.l.b16 %v2071
        %v2095 = vpack.c.b16 %v2088, %v2087
        %v2096 = vpack.c.b16 %v2090, %v2089
        %v2097 = vpack.c.b16 %v2092, %v2091
        %v2098 = vpack.c.b16 %v2094, %v2093
        %vm2103 = vcmask 523264
        %v2105 = vsel %vm2103, %v2063, 0
        %2107 = vmatprep.subr.bf16.mxu0 0
        %2108 = vmatpush1.bf16.msra.mxu0 %v2095
        %2109 = vmatprep.subr.bf16.mxu0 0
        %2110 = vmatpush1.bf16.msra.mxu0 %v2096
        %2111 = vmatprep.subr.bf16.mxu0 0
        %2112 = vmatpush1.bf16.msra.mxu0 %v2097
        %2113 = vmatprep.subr.bf16.mxu0 0
        %2114 = vmatpush1.bf16.msra.mxu0 %v2098
        %2115 = vmatprep.subr.bf16.mxu0 0
        %2116 = vmatpush1.bf16.msra.mxu0 0
        %2117 = vmatprep.subr.bf16.mxu0 0
        %2118 = vmatpush1.bf16.msra.mxu0 0
        %2119 = vmatprep.subr.bf16.mxu0 0
        %2120 = vmatpush1.bf16.msra.mxu0 0
        %2121 = vmatprep.subr.bf16.mxu0 0
        %2122 = vmatpush1.bf16.msra.mxu0 0
        %2123 = vmatprep.subr.bf16.mxu0 0
        %2124 = vmatpush1.bf16.msra.mxu0 0
        %2125 = vmatprep.subr.bf16.mxu0 0
        %2126 = vmatpush1.bf16.msra.mxu0 0
        %2127 = vmatprep.subr.bf16.mxu0 0
        %2128 = vmatpush1.bf16.msra.mxu0 0
        %2129 = vmatprep.subr.bf16.mxu0 0
        %2130 = vmatpush1.bf16.msra.mxu0 0
        %2131 = vmatprep.subr.bf16.mxu0 0
        %2132 = vmatpush1.bf16.msra.mxu0 0
        %2133 = vmatprep.subr.bf16.mxu0 0
        %2134 = vmatpush1.bf16.msra.mxu0 0
        %2135 = vmatprep.subr.bf16.mxu0 0
        %2136 = vmatpush1.bf16.msra.mxu0 0
        %2137 = vmatprep.subr.bf16.mxu0 0
        %2138 = vmatpush1.bf16.msra.mxu0 0
        %2139 = vmatprep.mubr.bf16.mxu0 0
        %2140 = vmatmul.mubr.bf16.gmra.mrb[0].mxu0 %v2105
        %v2141 = vpop.f32.mrb[0].mxu0
        %v2142 = vadd.f32 %v2077, %v2141
        %v2143 = vpop.f32.mrb[0].mxu0
        %v2144 = vpop.f32.mrb[0].mxu0
        %v2145 = vpop.f32.mrb[0].mxu0
        %2146 = vdwg.mxu0
        %v2147 = vadd.f32 %v1994, %v2142
        %v2148 = vld [vmem:[%s15] sm:$0x1]
        %v2149 = vld [vmem:[%s16] sm:$0x1]
        %v2150 = vsel %vm570, %v2147, 0.0
        %2151 = vadd.xlane.f32.xlu0 %v2150
        %v2152 = vpop.xlane.xlu0 %2151
        %v2153 = vmul.f32 %v2152, %v1970
        %v2154 = vsub.f32 %v2147, %v2153
        %v2155 = vmul.f32 %v2154, %v2154
        %v2156 = vsel %vm570, %v2155, 0.0
        %2157 = vadd.xlane.f32.xlu0 %v2156
        %v2158 = vpop.xlane.xlu0 %2157
        %v2159 = vmul.f32 %v2158, %v1970
        %v2160 = vadd.f32 %v2159, 1e-05
        %v2161 = vrsqrt.pop %v2160
        %v2162 = vmul.f32 %v2154, %v2161
        %v2164 = vlaneseq
        %v2165 = vshrl.u32 %v2164, 7
        %v2166 = vsub.s32 0, %v2165
        %v2167 = vrot.slane %v2148, %v2166
        %v2169 = vmul.f32 %v2162, %v2167
        %v2171 = vlaneseq
        %v2172 = vshrl.u32 %v2171, 7
        %v2173 = vsub.s32 0, %v2172
        %v2174 = vrot.slane %v2149, %v2173
        %v2176 = vadd.f32 %v2169, %v2174
        %2177 = vst.msk [vmem:[%s539] sm:$0xff] %vm570, %v2176
        %s2178 = sand.u32 %s401, 1
        %s2179 = scalar_lea.sflag [#allocation3], %s2178
        %s2180 = sand.u32 %s401, 1
        %s2181 = smul.addr %s2180, 8
        %s2182 = scalar_lea.vmem [#allocation2], %s2181
        // Predicated region
        $region89: #{tpu_custom_call.1} parent=87 // pred_check
          %p2183 = pneg %p411
        $region90: #{tpu_custom_call.1} parent=87 // pred_check_branch
          %2185 = sbr.rel (%p2183) target = $region92
        $region91: #{tpu_custom_call.1} parent=87 // pred_region
          %s2187 = ssub.s32 128, 128
          %2188 = vsyncadd %s2179, %s2187
          %s2189 = smul.addr %s31, 128
          %s2190 = scalar_lea.hbm %s17, %s2189
          %s2192 = sshll.u32 %s2182, 4
          %s2193 = int_to_ptr.vmem [resolvable:$true] %s2192
          %2195 = dma.vmem_to_hbm [thread:$0]  %s2193, 128, %s2190, %s2179
        $region92: #{tpu_custom_call.1} parent=87 // pred_fallthru
          _
      $region88: #{tpu_custom_call.1} parent=5 // pred_fallthru
        _
      %p2196 = scmp.le.s32.totalorder 2, %s26
      // Predicated region
      $region93: #{tpu_custom_call.1} parent=5 // pred_check
        %p2197 = pneg %p2196
      $region94: #{tpu_custom_call.1} parent=5 // pred_check_branch
        %2199 = sbr.rel (%p2197) target = $region96
      $region95: #{tpu_custom_call.1} parent=5 // pred_region
        %s2200 = ssub.s32 %s26, 2
        // Predicated region
        $region97: #{tpu_custom_call.1} parent=95 // pred_check
          %p2201 = pneg %p417
        $region98: #{tpu_custom_call.1} parent=95 // pred_check_branch
          %2203 = sbr.rel (%p2201) target = $region100
        $region99: #{tpu_custom_call.1} parent=95 // pred_region
          %s2204 = sand.u32 %s402, 1
          %s2205 = scalar_lea.sflag [#allocation3], %s2204
          %s2206 = sand.u32 %s402, 1
          %s2207 = smul.addr %s2206, 8
          %s2208 = scalar_lea.vmem [#allocation2], %s2207
          %2209 = dma.done %s2205, 128
        $region100: #{tpu_custom_call.1} parent=95 // pred_fallthru
          _
      $region96: #{tpu_custom_call.1} parent=5 // pred_fallthru
        _
    $region6: #{tpu_custom_call.1} parent=1 // loop_footer
      %s30 = sadd.s32 1, %s26
    $region7: #{tpu_custom_call.1} parent=1 // loop_footer_branch
      %25 = sbr.rel target = $region3
    $region8: #{tpu_custom_call.1} parent=1 // loop_exit
      _
    %2210 = vsyncpa [#allocation3], 1
    %s2211 = scalar_lea.sflag [#allocation3], 1
    %2212 = vsyncpa %s2211, 1

</llo_original>
